<compile_context>
chip_gen: v7x
topology: tpu7x:2x2x1
jax: 0.10.0
libtpu: 0.0.40
codegen_flags: <defaults>
</compile_context>

<pallas_src>
import jax
import jax.numpy as jnp
from jax.experimental import pallas as pl
from jax.experimental.pallas import tpu as pltpu

LATENT_DIM = 10
HIDDEN = 1000

IN_PAD = 16      # 10 -> 16  (layer-1 contraction dim)
H_PAD = 1024     # 1000 -> 1024 (clean (8,128) tiling)


def _round_up(x, m):
    return (x + m - 1) // m * m


def _discriminator_kernel(z_ref, w1_ref, b1_ref, w2_ref, b2_ref, w3_ref, b3_ref,
                          out_ref, h1_scratch, acc_scratch):
    """Grid = (batch_blocks, n_blocks).  Streams w2/w3/b2 along their output
    (N) dimension; the batch tile's h1 is computed once and kept in VMEM."""
    n = pl.program_id(1)

    # First N block for this batch tile: compute h1 once, reset the logit acc.
    @pl.when(n == 0)
    def _():
        # Layer 1: Linear(16 -> 1024) + ReLU   (bf16 MXU, f32 accumulate)
        h1 = jnp.dot(z_ref[...], w1_ref[...],
                     preferred_element_type=jnp.float32)
        h1 = jnp.maximum(h1 + b1_ref[...], 0.0)
        h1_scratch[...] = h1.astype(jnp.bfloat16)
        acc_scratch[...] = jnp.zeros_like(acc_scratch)

    # Layer 2 (this N block): Linear(1024 -> HN) + ReLU, streamed w2 block.
    h2 = jnp.dot(h1_scratch[...], w2_ref[...],
                 preferred_element_type=jnp.float32)
    h2 = jnp.maximum(h2 + b2_ref[...], 0.0)                        # f32

    # Layer 3 partial sum for this N block: VPU multiply + XLU lane reduce.
    acc_scratch[...] += jnp.sum(h2 * w3_ref[...], axis=-1, keepdims=True)

    # Last N block: add output bias and apply sigmoid.
    @pl.when(n == pl.num_programs(1) - 1)
    def _():
        out_ref[...] = jax.nn.sigmoid(acc_scratch[...] + b3_ref[...])


def discriminator_forward(z, padded_params, *, block_b=256, n_block=256):
    """z: (B, latent_dim) float32.  Returns validity (B, 1) float32."""
    w1, b1, w2, b2, w3, b3 = padded_params
    B = z.shape[0]

    assert H_PAD % n_block == 0
    hn = n_block
    n_blocks = H_PAD // hn

    # Batch tile: multiple of 16 (bf16 sublane pack), capped at block_b.
    # v5e/v6e: prefer one large step (serial grid).  v7x: use >=2 batch steps
    # (batch axis is "parallel") so both TensorCores get work.
    tb = min(block_b, _round_up(B, 16))
    tb = max(16, _round_up(tb, 16))
    b_pad = _round_up(B, tb)
    grid = (b_pad // tb, n_blocks)

    # Pad batch + feature dims and cast the activation input to bf16 once.
    z_p = jnp.zeros((b_pad, IN_PAD), jnp.bfloat16)
    z_p = z_p.at[:B, :LATENT_DIM].set(z.astype(jnp.bfloat16))

    out = pl.pallas_call(
        _discriminator_kernel,
        out_shape=jax.ShapeDtypeStruct((b_pad, 1), jnp.float32),
        grid=grid,
        in_specs=[
            pl.BlockSpec((tb, IN_PAD), lambda i, n: (i, 0)),    # z tile (bf16)
            pl.BlockSpec((IN_PAD, H_PAD), lambda i, n: (0, 0)),  # w1 (bf16)
            pl.BlockSpec((1, H_PAD), lambda i, n: (0, 0)),       # b1 (f32)
            pl.BlockSpec((H_PAD, hn), lambda i, n: (0, n)),      # w2 stream (bf16)
            pl.BlockSpec((1, hn), lambda i, n: (0, n)),          # b2 stream (f32)
            pl.BlockSpec((1, hn), lambda i, n: (0, n)),          # w3 row stream (f32)
            pl.BlockSpec((1, 1), lambda i, n: (0, 0)),           # b3 (f32)
        ],
        out_specs=pl.BlockSpec((tb, 1), lambda i, n: (i, 0)),
        scratch_shapes=[
            pltpu.VMEM((tb, H_PAD), jnp.bfloat16),   # h1 (reused across N blocks)
            pltpu.VMEM((tb, 1), jnp.float32),        # layer-3 logit accumulator
        ],
        compiler_params=pltpu.CompilerParams(
            dimension_semantics=("parallel", "arbitrary"),
            vmem_limit_bytes=16 << 20,
        ),
    )(z_p, w1, b1, w2, b2, w3, b3)

    return out[:B]


def init_params(key):
    """PyTorch-style Linear init: U(-1/sqrt(fan_in), 1/sqrt(fan_in)).
    Returns plain f32 params, weights already transposed to (in, out)."""
    def linear(k, fan_in, fan_out):
        kw, kb = jax.random.split(k)
        bound = 1.0 / float(jnp.sqrt(float(fan_in)))
        w = jax.random.uniform(kw, (fan_in, fan_out), jnp.float32, -bound, bound)
        b = jax.random.uniform(kb, (fan_out,), jnp.float32, -bound, bound)
        return w, b

    k1, k2, k3 = jax.random.split(key, 3)
    w1, b1 = linear(k1, LATENT_DIM, HIDDEN)
    w2, b2 = linear(k2, HIDDEN, HIDDEN)
    w3, b3 = linear(k3, HIDDEN, 1)
    return (w1, b1, w2, b2, w3, b3)


def pad_params(params_f32):
    """Pad to (16, 1024)/(1024, 1024), cast matmul weights to bf16 (once),
    keep biases and the output row-weight in f32.  Padded entries are zero."""
    w1, b1, w2, b2, w3, b3 = params_f32
    w1p = (jnp.zeros((IN_PAD, H_PAD), jnp.float32)
           .at[:LATENT_DIM, :HIDDEN].set(w1).astype(jnp.bfloat16))
    b1p = jnp.zeros((1, H_PAD), jnp.float32).at[0, :HIDDEN].set(b1)
    w2p = (jnp.zeros((H_PAD, H_PAD), jnp.float32)
           .at[:HIDDEN, :HIDDEN].set(w2).astype(jnp.bfloat16))
    b2p = jnp.zeros((1, H_PAD), jnp.float32).at[0, :HIDDEN].set(b2)
    w3p = jnp.zeros((1, H_PAD), jnp.float32).at[0, :HIDDEN].set(w3[:, 0])
    b3p = jnp.reshape(b3, (1, 1)).astype(jnp.float32)
    return (w1p, b1p, w2p, b2p, w3p, b3p)


def reference_forward_f32(z, params_f32):
    """Pure-f32 reference (exact PyTorch module semantics)."""
    w1, b1, w2, b2, w3, b3 = params_f32
    h1 = jnp.maximum(z @ w1 + b1, 0.0)
    h2 = jnp.maximum(h1 @ w2 + b2, 0.0)
    return jax.nn.sigmoid(h2 @ w3 + b3)


def reference_forward_matched(z, padded_params):
    """Reference that mirrors the kernel's bf16/f32 numerics."""
    w1, b1, w2, b2, w3, b3 = padded_params
    B = z.shape[0]
    zp = jnp.zeros((B, IN_PAD), jnp.bfloat16).at[:, :LATENT_DIM].set(
        z.astype(jnp.bfloat16))
    h1 = jnp.maximum(
        jnp.dot(zp, w1, preferred_element_type=jnp.float32) + b1, 0.0)
    h2 = jnp.maximum(
        jnp.dot(h1.astype(jnp.bfloat16), w2,
                preferred_element_type=jnp.float32) + b2, 0.0)
    logits = jnp.sum(h2 * w3, axis=-1, keepdims=True) + b3
    return jax.nn.sigmoid(logits)


if __name__ == "__main__":
    key = jax.random.PRNGKey(0)
    k_params, k_z = jax.random.split(key)

    params_f32 = init_params(k_params)
    padded = pad_params(params_f32)

    batch = 64
    z = jax.random.normal(k_z, (batch, LATENT_DIM), dtype=jnp.float32)

    out = discriminator_forward(z, padded)        # grid = (1, 4)
    out = jax.block_until_ready(out)
    assert out.shape == (batch, 1), out.shape

    # Tight check vs. a reference with matching bf16/f32 numerics.
    ref_bf16 = reference_forward_matched(z, padded)
    assert jnp.allclose(out, ref_bf16, atol=1e-3, rtol=1e-3), \
        "mismatch vs bf16-matched reference"

    # Loose check vs. the exact f32 module semantics (bf16 rounding only).
    ref_f32 = reference_forward_f32(z, params_f32)
    assert jnp.allclose(out, ref_f32, atol=2e-2, rtol=2e-2), \
        "mismatch vs f32 reference"

    print("KERNEL_OK")
</pallas_src>

<mosaic_0001>
module attributes {stable_mosaic.version = 11 : i64} {
  func.func @_discriminator_kernel(%arg0: i32, %arg1: i32, %arg2: memref<64x16xbf16, #tpu.memory_space<vmem>>, %arg3: memref<16x1024xbf16, #tpu.memory_space<vmem>>, %arg4: memref<1x1024xf32, #tpu.memory_space<vmem>>, %arg5: memref<1024x256xbf16, #tpu.memory_space<vmem>>, %arg6: memref<1x256xf32, #tpu.memory_space<vmem>>, %arg7: memref<1x256xf32, #tpu.memory_space<vmem>>, %arg8: memref<1x1xf32, #tpu.memory_space<vmem>>, %arg9: memref<64x1xf32, #tpu.memory_space<vmem>>, %arg10: memref<64x1024xbf16, #tpu.memory_space<vmem>>, %arg11: memref<64x1xf32, #tpu.memory_space<vmem>>) attributes {dimension_semantics = [#tpu.dimension_semantics<parallel>, #tpu.dimension_semantics<arbitrary>], iteration_bounds = array<i64: 1, 4>, scalar_prefetch = 0 : i64, scratch_operands = 2 : i64, tpu.core_type = #tpu.core_type<tc>, window_params = [{transform_indices = @transform_0, window_bounds = array<i64: 64, 16>}, {pipeline_mode = #tpu.pipeline_mode<synchronous>, transform_indices = @transform_1, window_bounds = array<i64: 16, 1024>}, {pipeline_mode = #tpu.pipeline_mode<synchronous>, transform_indices = @transform_2, window_bounds = array<i64: 1, 1024>}, {transform_indices = @transform_3, window_bounds = array<i64: 1024, 256>}, {transform_indices = @transform_4, window_bounds = array<i64: 1, 256>}, {transform_indices = @transform_5, window_bounds = array<i64: 1, 256>}, {pipeline_mode = #tpu.pipeline_mode<synchronous>, transform_indices = @transform_6, window_bounds = array<i64: 1, 1>}, {transform_indices = @transform_7, window_bounds = array<i64: 64, 1>}]} {
    %c0_i32 = arith.constant 0 : i32
    %0 = arith.cmpi eq, %arg1, %c0_i32 : i32
    %1 = arith.extui %0 : i1 to i32
    %c0_i32_0 = arith.constant 0 : i32
    %2 = arith.cmpi ne, %1, %c0_i32_0 : i32
    scf.if %2 {
      %c0_15 = arith.constant 0 : index
      %c0_16 = arith.constant 0 : index
      %22 = vector.load %arg2[%c0_15, %c0_16] : memref<64x16xbf16, #tpu.memory_space<vmem>>, vector<64x16xbf16>
      %c0_17 = arith.constant 0 : index
      %c0_18 = arith.constant 0 : index
      %23 = vector.load %arg3[%c0_17, %c0_18] : memref<16x1024xbf16, #tpu.memory_space<vmem>>, vector<16x1024xbf16>
      %cst_19 = arith.constant dense<0.000000e+00> : vector<64x1024xf32>
      %24 = tpu.matmul %22, %23, %cst_19 {dimension_numbers = #tpu.dot_dimension_numbers<[1], [0], [0], [1], [0, 0, 1, 1], [], []>} : vector<64x16xbf16>, vector<16x1024xbf16>, vector<64x1024xf32> -> vector<64x1024xf32>
      %c0_20 = arith.constant 0 : index
      %c0_21 = arith.constant 0 : index
      %25 = vector.load %arg4[%c0_20, %c0_21] : memref<1x1024xf32, #tpu.memory_space<vmem>>, vector<1x1024xf32>
      %26 = vector.broadcast %25 : vector<1x1024xf32> to vector<64x1024xf32>
      %27 = arith.addf %24, %26 : vector<64x1024xf32>
      %cst_22 = arith.constant 0.000000e+00 : f32
      %28 = vector.broadcast %cst_22 : f32 to vector<64x1024xf32>
      %29 = arith.maximumf %27, %28 : vector<64x1024xf32>
      %30 = arith.truncf %29 : vector<64x1024xf32> to vector<64x1024xbf16>
      %c0_23 = arith.constant 0 : index
      %c0_24 = arith.constant 0 : index
      %31 = vector.load %arg10[%c0_23, %c0_24] : memref<64x1024xbf16, #tpu.memory_space<vmem>>, vector<64x1024xbf16>
      tpu.vector_store %arg10[%c0_23, %c0_24], %30 {strides = array<i32>} : memref<64x1024xbf16, #tpu.memory_space<vmem>>, vector<64x1024xbf16>,
      %cst_25 = arith.constant 0.000000e+00 : f32
      %32 = vector.broadcast %cst_25 : f32 to vector<64x1xf32>
      %c0_26 = arith.constant 0 : index
      %c0_27 = arith.constant 0 : index
      %33 = vector.load %arg11[%c0_26, %c0_27] : memref<64x1xf32, #tpu.memory_space<vmem>>, vector<64x1xf32>
      tpu.vector_store %arg11[%c0_26, %c0_27], %32 {strides = array<i32>} : memref<64x1xf32, #tpu.memory_space<vmem>>, vector<64x1xf32>,
    } else {
    }
    %c0 = arith.constant 0 : index
    %c0_1 = arith.constant 0 : index
    %3 = vector.load %arg10[%c0, %c0_1] : memref<64x1024xbf16, #tpu.memory_space<vmem>>, vector<64x1024xbf16>
    %c0_2 = arith.constant 0 : index
    %c0_3 = arith.constant 0 : index
    %4 = vector.load %arg5[%c0_2, %c0_3] : memref<1024x256xbf16, #tpu.memory_space<vmem>>, vector<1024x256xbf16>
    %cst = arith.constant dense<0.000000e+00> : vector<64x256xf32>
    %5 = tpu.matmul %3, %4, %cst {dimension_numbers = #tpu.dot_dimension_numbers<[1], [0], [0], [1], [0, 0, 1, 1], [], []>} : vector<64x1024xbf16>, vector<1024x256xbf16>, vector<64x256xf32> -> vector<64x256xf32>
    %c0_4 = arith.constant 0 : index
    %c0_5 = arith.constant 0 : index
    %6 = vector.load %arg6[%c0_4, %c0_5] : memref<1x256xf32, #tpu.memory_space<vmem>>, vector<1x256xf32>
    %7 = vector.broadcast %6 : vector<1x256xf32> to vector<64x256xf32>
    %8 = arith.addf %5, %7 : vector<64x256xf32>
    %cst_6 = arith.constant 0.000000e+00 : f32
    %9 = vector.broadcast %cst_6 : f32 to vector<64x256xf32>
    %10 = arith.maximumf %8, %9 : vector<64x256xf32>
    %c0_7 = arith.constant 0 : index
    %c0_8 = arith.constant 0 : index
    %11 = vector.load %arg11[%c0_7, %c0_8] : memref<64x1xf32, #tpu.memory_space<vmem>>, vector<64x1xf32>
    %c0_9 = arith.constant 0 : index
    %c0_10 = arith.constant 0 : index
    %12 = vector.load %arg7[%c0_9, %c0_10] : memref<1x256xf32, #tpu.memory_space<vmem>>, vector<1x256xf32>
    %13 = vector.broadcast %12 : vector<1x256xf32> to vector<64x256xf32>
    %14 = arith.mulf %10, %13 : vector<64x256xf32>
    %cst_11 = arith.constant dense<0.000000e+00> : vector<64xf32>
    %15 = vector.multi_reduction <add>, %14, %cst_11 [1] : vector<64x256xf32> to vector<64xf32>
    %16 = vector.shape_cast %15 : vector<64xf32> to vector<64x1xf32>
    %17 = arith.addf %11, %16 : vector<64x1xf32>
    %c0_12 = arith.constant 0 : index
    %c0_13 = arith.constant 0 : index
    %18 = vector.load %arg11[%c0_12, %c0_13] : memref<64x1xf32, #tpu.memory_space<vmem>>, vector<64x1xf32>
    tpu.vector_store %arg11[%c0_12, %c0_13], %17 {strides = array<i32>} : memref<64x1xf32, #tpu.memory_space<vmem>>, vector<64x1xf32>,
    %c3_i32 = arith.constant 3 : i32
    %19 = arith.cmpi eq, %arg1, %c3_i32 : i32
    %20 = arith.extui %19 : i1 to i32
    %c0_i32_14 = arith.constant 0 : i32
    %21 = arith.cmpi ne, %20, %c0_i32_14 : i32
    scf.if %21 {
      %c0_15 = arith.constant 0 : index
      %c0_16 = arith.constant 0 : index
      %22 = vector.load %arg11[%c0_15, %c0_16] : memref<64x1xf32, #tpu.memory_space<vmem>>, vector<64x1xf32>
      %c0_17 = arith.constant 0 : index
      %c0_18 = arith.constant 0 : index
      %23 = vector.load %arg8[%c0_17, %c0_18] : memref<1x1xf32, #tpu.memory_space<vmem>>, vector<1x1xf32>
      %24 = vector.broadcast %23 : vector<1x1xf32> to vector<64x1xf32>
      %25 = arith.addf %22, %24 : vector<64x1xf32>
      %26 = arith.negf %25 : vector<64x1xf32>
      %27 = math.exp %26 : vector<64x1xf32>
      %cst_19 = arith.constant 1.000000e+00 : f32
      %28 = vector.broadcast %cst_19 : f32 to vector<64x1xf32>
      %29 = arith.addf %28, %27 : vector<64x1xf32>
      %30 = arith.divf %28, %29 : vector<64x1xf32>
      %c0_20 = arith.constant 0 : index
      %c0_21 = arith.constant 0 : index
      %31 = vector.load %arg9[%c0_20, %c0_21] : memref<64x1xf32, #tpu.memory_space<vmem>>, vector<64x1xf32>
      tpu.vector_store %arg9[%c0_20, %c0_21], %30 {strides = array<i32>} : memref<64x1xf32, #tpu.memory_space<vmem>>, vector<64x1xf32>,
    } else {
    }
    return
  }
  func.func @transform_0(%arg0: i32, %arg1: i32) -> (i32, i32) {
    %c0_i32 = arith.constant 0 : i32
    %c0_i32_0 = arith.constant 0 : i32
    return %arg0, %c0_i32 : i32, i32
  }
  func.func @transform_1(%arg0: i32, %arg1: i32) -> (i32, i32) {
    %c0_i32 = arith.constant 0 : i32
    %c0_i32_0 = arith.constant 0 : i32
    %c0_i32_1 = arith.constant 0 : i32
    return %c0_i32, %c0_i32_0 : i32, i32
  }
  func.func @transform_2(%arg0: i32, %arg1: i32) -> (i32, i32) {
    %c0_i32 = arith.constant 0 : i32
    %c0_i32_0 = arith.constant 0 : i32
    %c0_i32_1 = arith.constant 0 : i32
    return %c0_i32, %c0_i32_0 : i32, i32
  }
  func.func @transform_3(%arg0: i32, %arg1: i32) -> (i32, i32) {
    %c0_i32 = arith.constant 0 : i32
    %c0_i32_0 = arith.constant 0 : i32
    return %c0_i32, %arg1 : i32, i32
  }
  func.func @transform_4(%arg0: i32, %arg1: i32) -> (i32, i32) {
    %c0_i32 = arith.constant 0 : i32
    %c0_i32_0 = arith.constant 0 : i32
    return %c0_i32, %arg1 : i32, i32
  }
  func.func @transform_5(%arg0: i32, %arg1: i32) -> (i32, i32) {
    %c0_i32 = arith.constant 0 : i32
    %c0_i32_0 = arith.constant 0 : i32
    return %c0_i32, %arg1 : i32, i32
  }
  func.func @transform_6(%arg0: i32, %arg1: i32) -> (i32, i32) {
    %c0_i32 = arith.constant 0 : i32
    %c0_i32_0 = arith.constant 0 : i32
    %c0_i32_1 = arith.constant 0 : i32
    return %c0_i32, %c0_i32_0 : i32, i32
  }
  func.func @transform_7(%arg0: i32, %arg1: i32) -> (i32, i32) {
    %c0_i32 = arith.constant 0 : i32
    %c0_i32_0 = arith.constant 0 : i32
    return %arg0, %c0_i32 : i32, i32
  }
}

</mosaic_0001>

<llo_original>
// kernel: tpu_custom_call.1
$region0: #{tpu_custom_call.1}
  #allocation0 [shape = 'u32[]', space=smem, size = 0x4, offset = 0x4, fixed_abs, tag = 'smem constant byte address 0x4 - core index']
  #allocation1 [shape = 'u32[144,128]{1,0:T(1,128)}', space=vmem, size = 0x12000, scoped, tag = 'internal scratch']
  #allocation2 [shape = 'bf16[64,1024]{1,0:T(16,128)(2,1)}', space=vmem, size = 0x20000, scoped, tag = 'scratch operand']
  #allocation3 [shape = 'f32[64,1]{1,0:T(8,128)}', space=vmem, size = 0x8000, scoped, tag = 'scratch operand']
  #allocation4 [shape = 'f32[1,1]{1,0:T(1,128)S(1)}', space=vmem, size = 0x200, scoped, tag = 'scoped memory for tpu_custom_call.1']
  %s0 = inlined_call_operand.vmem [shape: bf16[64,16], index: 0, kind: input, shape index: {}]
  %s1 = inlined_call_operand.hbm [shape: bf16[16,1024], index: 1, kind: input, shape index: {}]
  %s2 = inlined_call_operand.hbm [shape: f32[1,1024], index: 2, kind: input, shape index: {}]
  %s3 = inlined_call_operand.hbm [shape: bf16[1024,1024], index: 3, kind: input, shape index: {}]
  %s4 = inlined_call_operand.hbm [shape: f32[1,1024], index: 4, kind: input, shape index: {}]
  %s5 = inlined_call_operand.hbm [shape: f32[1,1024], index: 5, kind: input, shape index: {}]
  %s6 = inlined_call_operand.<no memory space> [shape: f32[1,1], index: 6, kind: input, shape index: {}]
  %s7 = inlined_call_operand.vmem [shape: f32[64,1], index: 7, kind: output, shape index: {}]
  %s8 = sld [smem:[#allocation0]]
  $region89: #{tpu_custom_call.1} parent=0
    _
  %s10 = ssub.s32 1, %s8
  %s11 = scalar_select 0, %s10, %s8
  %v12 = vstv %s6
  %13 = vst [vmem:[#allocation4] sm:$0x1] %v12
  $region1: #{tpu_custom_call.1} parent=0
    #allocation5 [shape = 'u8[32768]{0}', space=vmem, size = 0x8000, scoped, tag = 'input window, operand 1, single buffered']
    #allocation6 [shape = 's32[2]{0}', space=sflag, size = 0x8, scoped, tag = 'scoped memory for tpu_custom_call.1']
    #allocation7 [shape = 'u8[4096]{0}', space=vmem, size = 0x1000, scoped, tag = 'input window, operand 2, single buffered']
    #allocation8 [shape = 's32[1]{0}', space=sflag, size = 0x4, scoped, tag = 'scoped memory for tpu_custom_call.1']
    #allocation9 [shape = 'u8[1048576]{0}', space=vmem, size = 0x100000, scoped, tag = 'input window, operand 3']
    #allocation10 [shape = 'u8[2048]{0}', space=vmem, size = 0x800, scoped, tag = 'input window, operand 4']
    #allocation11 [shape = 'u8[2048]{0}', space=vmem, size = 0x800, scoped, tag = 'input window, operand 5']
    %14 = vsyncpa [#allocation6], 0
    %15 = vsyncpa [#allocation8], 0
    loop: start=0, step=1, limit=6
    $region2: #{tpu_custom_call.1} parent=1 // loop_pre_header
      _
    $region3: #{tpu_custom_call.1} parent=1 // loop_header
      %s17 = sphi 0, %s21
      %p18 = scmp.ge.s32.totalorder %s17, 6
      %s24 = sphi 0, %s36
      %s25 = sphi 0, %s32
      %s26 = sphi 0, %s24
      %s27 = sphi 0, %s25
      %s28 = sphi 0, %s26
      %s29 = sphi 0, %s27
      %s39 = sphi 0, %s41
      %s42 = sphi 0, %s39
      %s43 = sphi 0, %s42
      %s59 = sphi 0, %s43
      %s63 = sphi 0, %s63
      %s65 = sphi 0, %s63
      %s66 = sphi 0, %s65
      %s80 = sphi 0, %s66
      %s84 = sphi 0, %s84
      %s86 = sphi 0, %s84
      %s87 = sphi 0, %s86
      %s101 = sphi 0, %s87
      %s107 = sphi 0, %s109
      %s110 = sphi 0, %s107
      %s111 = sphi 0, %s110
      %s127 = sphi 0, %s111
      %s133 = sphi 0, %s135
      %s136 = sphi 0, %s133
      %s137 = sphi 0, %s136
      %s153 = sphi 0, %s137
      %s159 = sphi 0, %s161
      %s162 = sphi 0, %s159
      %s163 = sphi 0, %s162
      %s179 = sphi 0, %s163
      %s183 = sphi 0, %s183
      %s185 = sphi 0, %s183
      %s186 = sphi 0, %s185
      %s200 = sphi 0, %s186
      %s206 = sphi 0, %s208
      %s209 = sphi 0, %s206
      %s210 = sphi 0, %s209
      %s226 = sphi 0, %s210
    $region4: #{tpu_custom_call.1} parent=1 // loop_header_branch
      %20 = sbr.rel (%p18) target = $region8
    $region5: #{tpu_custom_call.1} parent=1 // loop_body
      %s22 = ssub.s32 %s17, 1
      %s23 = ssub.s32 %s17, 2
      %s30 = sadd.s32 1, %s25
      %p31 = scmp.ge.s32.totalorder %s30, 4
      %s32 = scalar_select %p31, 0, %s30
      %s33 = sadd.s32 1, %s24
      %s34 = scalar_select %p31, %s33, %s24
      %p35 = scmp.ge.s32.totalorder %s34, 1
      %s36 = scalar_select %p35, 0, %s34
      %s37 = ssub.s32 %s24, %s36
      %p38 = scmp.eq.s32.totalorder %s37, 0
      %s40 = sadd.s32 %s39, 1
      %s41 = scalar_select %p38, %s39, %s40
      %p44 = pneg %p38
      %p45 = scmp.eq.s32.totalorder %s17, 3
      %p46 = por %p44, %p45
      %p47 = scmp.ne.s32.totalorder %s39, %s42
      %p48 = scmp.eq.s32.totalorder %s17, 0
      %p49 = por %p47, %p48
      %p50 = scmp.ne.s32.totalorder %s39, %s42
      %p51 = scmp.eq.s32.totalorder %s22, 3
      %p52 = por %p50, %p51
      %p53 = scmp.ne.s32.totalorder %s42, %s43
      %p54 = scmp.eq.s32.totalorder %s22, 0
      %p55 = por %p53, %p54
      %p56 = scmp.ne.s32.totalorder %s42, %s43
      %p57 = scmp.eq.s32.totalorder %s23, 3
      %p58 = por %p56, %p57
      %p60 = scmp.ne.s32.totalorder %s43, %s59
      %p61 = scmp.eq.s32.totalorder %s23, 0
      %p62 = por %p60, %p61
      %s64 = sadd.s32 %s63, 1
      %p67 = scmp.eq.s32.totalorder %s17, 3
      %p68 = scmp.ne.s32.totalorder %s63, %s65
      %p69 = scmp.eq.s32.totalorder %s17, 0
      %p70 = por %p68, %p69
      %p71 = scmp.ne.s32.totalorder %s63, %s65
      %p72 = scmp.eq.s32.totalorder %s22, 3
      %p73 = por %p71, %p72
      %p74 = scmp.ne.s32.totalorder %s65, %s66
      %p75 = scmp.eq.s32.totalorder %s22, 0
      %p76 = por %p74, %p75
      %p77 = scmp.ne.s32.totalorder %s65, %s66
      %p78 = scmp.eq.s32.totalorder %s23, 3
      %p79 = por %p77, %p78
      %p81 = scmp.ne.s32.totalorder %s66, %s80
      %p82 = scmp.eq.s32.totalorder %s23, 0
      %p83 = por %p81, %p82
      %s85 = sadd.s32 %s84, 1
      %p88 = scmp.eq.s32.totalorder %s17, 3
      %p89 = scmp.ne.s32.totalorder %s84, %s86
      %p90 = scmp.eq.s32.totalorder %s17, 0
      %p91 = por %p89, %p90
      %p92 = scmp.ne.s32.totalorder %s84, %s86
      %p93 = scmp.eq.s32.totalorder %s22, 3
      %p94 = por %p92, %p93
      %p95 = scmp.ne.s32.totalorder %s86, %s87
      %p96 = scmp.eq.s32.totalorder %s22, 0
      %p97 = por %p95, %p96
      %p98 = scmp.ne.s32.totalorder %s86, %s87
      %p99 = scmp.eq.s32.totalorder %s23, 3
      %p100 = por %p98, %p99
      %p102 = scmp.ne.s32.totalorder %s87, %s101
      %p103 = scmp.eq.s32.totalorder %s23, 0
      %p104 = por %p102, %p103
      %s105 = ssub.s32 %s25, %s32
      %p106 = scmp.eq.s32.totalorder %s105, 0
      %s108 = sadd.s32 %s107, 1
      %s109 = scalar_select %p106, %s107, %s108
      %p112 = pneg %p106
      %p113 = scmp.eq.s32.totalorder %s17, 3
      %p114 = por %p112, %p113
      %p115 = scmp.ne.s32.totalorder %s107, %s110
      %p116 = scmp.eq.s32.totalorder %s17, 0
      %p117 = por %p115, %p116
      %p118 = scmp.ne.s32.totalorder %s107, %s110
      %p119 = scmp.eq.s32.totalorder %s22, 3
      %p120 = por %p118, %p119
      %p121 = scmp.ne.s32.totalorder %s110, %s111
      %p122 = scmp.eq.s32.totalorder %s22, 0
      %p123 = por %p121, %p122
      %p124 = scmp.ne.s32.totalorder %s110, %s111
      %p125 = scmp.eq.s32.totalorder %s23, 3
      %p126 = por %p124, %p125
      %p128 = scmp.ne.s32.totalorder %s111, %s127
      %p129 = scmp.eq.s32.totalorder %s23, 0
      %p130 = por %p128, %p129
      %s131 = ssub.s32 %s25, %s32
      %p132 = scmp.eq.s32.totalorder %s131, 0
      %s134 = sadd.s32 %s133, 1
      %s135 = scalar_select %p132, %s133, %s134
      %p138 = pneg %p132
      %p139 = scmp.eq.s32.totalorder %s17, 3
      %p140 = por %p138, %p139
      %p141 = scmp.ne.s32.totalorder %s133, %s136
      %p142 = scmp.eq.s32.totalorder %s17, 0
      %p143 = por %p141, %p142
      %p144 = scmp.ne.s32.totalorder %s133, %s136
      %p145 = scmp.eq.s32.totalorder %s22, 3
      %p146 = por %p144, %p145
      %p147 = scmp.ne.s32.totalorder %s136, %s137
      %p148 = scmp.eq.s32.totalorder %s22, 0
      %p149 = por %p147, %p148
      %p150 = scmp.ne.s32.totalorder %s136, %s137
      %p151 = scmp.eq.s32.totalorder %s23, 3
      %p152 = por %p150, %p151
      %p154 = scmp.ne.s32.totalorder %s137, %s153
      %p155 = scmp.eq.s32.totalorder %s23, 0
      %p156 = por %p154, %p155
      %s157 = ssub.s32 %s25, %s32
      %p158 = scmp.eq.s32.totalorder %s157, 0
      %s160 = sadd.s32 %s159, 1
      %s161 = scalar_select %p158, %s159, %s160
      %p164 = pneg %p158
      %p165 = scmp.eq.s32.totalorder %s17, 3
      %p166 = por %p164, %p165
      %p167 = scmp.ne.s32.totalorder %s159, %s162
      %p168 = scmp.eq.s32.totalorder %s17, 0
      %p169 = por %p167, %p168
      %p170 = scmp.ne.s32.totalorder %s159, %s162
      %p171 = scmp.eq.s32.totalorder %s22, 3
      %p172 = por %p170, %p171
      %p173 = scmp.ne.s32.totalorder %s162, %s163
      %p174 = scmp.eq.s32.totalorder %s22, 0
      %p175 = por %p173, %p174
      %p176 = scmp.ne.s32.totalorder %s162, %s163
      %p177 = scmp.eq.s32.totalorder %s23, 3
      %p178 = por %p176, %p177
      %p180 = scmp.ne.s32.totalorder %s163, %s179
      %p181 = scmp.eq.s32.totalorder %s23, 0
      %p182 = por %p180, %p181
      %s184 = sadd.s32 %s183, 1
      %p187 = scmp.eq.s32.totalorder %s17, 3
      %p188 = scmp.ne.s32.totalorder %s183, %s185
      %p189 = scmp.eq.s32.totalorder %s17, 0
      %p190 = por %p188, %p189
      %p191 = scmp.ne.s32.totalorder %s183, %s185
      %p192 = scmp.eq.s32.totalorder %s22, 3
      %p193 = por %p191, %p192
      %p194 = scmp.ne.s32.totalorder %s185, %s186
      %p195 = scmp.eq.s32.totalorder %s22, 0
      %p196 = por %p194, %p195
      %p197 = scmp.ne.s32.totalorder %s185, %s186
      %p198 = scmp.eq.s32.totalorder %s23, 3
      %p199 = por %p197, %p198
      %p201 = scmp.ne.s32.totalorder %s186, %s200
      %p202 = scmp.eq.s32.totalorder %s23, 0
      %p203 = por %p201, %p202
      %s204 = ssub.s32 %s24, %s36
      %p205 = scmp.eq.s32.totalorder %s204, 0
      %s207 = sadd.s32 %s206, 1
      %s208 = scalar_select %p205, %s206, %s207
      %p211 = pneg %p205
      %p212 = scmp.eq.s32.totalorder %s17, 3
      %p213 = por %p211, %p212
      %p214 = scmp.ne.s32.totalorder %s206, %s209
      %p215 = scmp.eq.s32.totalorder %s17, 0
      %p216 = por %p214, %p215
      %p217 = scmp.ne.s32.totalorder %s206, %s209
      %p218 = scmp.eq.s32.totalorder %s22, 3
      %p219 = por %p217, %p218
      %p220 = scmp.ne.s32.totalorder %s209, %s210
      %p221 = scmp.eq.s32.totalorder %s22, 0
      %p222 = por %p220, %p221
      %p223 = scmp.ne.s32.totalorder %s209, %s210
      %p224 = scmp.eq.s32.totalorder %s23, 3
      %p225 = por %p223, %p224
      %p227 = scmp.ne.s32.totalorder %s210, %s226
      %p228 = scmp.eq.s32.totalorder %s23, 0
      %p229 = por %p227, %p228
      %p230 = scmp.le.s32.totalorder 1, %s17
      %p231 = scmp.lt.s32.totalorder %s17, 5
      %p232 = pnand %p230, %p231
      %p233 = pneg %p232
      // Predicated region
      $region9: #{tpu_custom_call.1} parent=5 // pred_check
        _
      $region10: #{tpu_custom_call.1} parent=5 // pred_check_branch
        %235 = sbr.rel (%p232) target = $region12
      $region11: #{tpu_custom_call.1} parent=5 // pred_region
        %s236 = ssub.s32 %s17, 1
        // Predicated region
        $region13: #{tpu_custom_call.1} parent=11 // pred_check
          %p237 = pneg %p55
        $region14: #{tpu_custom_call.1} parent=11 // pred_check_branch
          %239 = sbr.rel (%p237) target = $region16
        $region15: #{tpu_custom_call.1} parent=11 // pred_region
          %s240 = smul.u32 8, %s26
          %p241 = scmp.lt.s32.totalorder %s240, 7
          %s242 = scalar_select %p241, %s240, 7
          %s243 = smul.addr %s242, 4
          %s244 = scalar_lea.vmem %s0, %s243
          %s245 = smul.u32 8, %s26
        $region16: #{tpu_custom_call.1} parent=11 // pred_fallthru
          _
        // Predicated region
        $region17: #{tpu_custom_call.1} parent=11 // pred_check
          %p246 = pneg %p76
        $region18: #{tpu_custom_call.1} parent=11 // pred_check_branch
          %248 = sbr.rel (%p246) target = $region20
        $region19: #{tpu_custom_call.1} parent=11 // pred_region
          %s250 = ssub.s32 1024, 1024
          %251 = vsyncadd [#allocation6], %s250
          %s252 = sshll.u32 [#allocation5], 4
          %s253 = int_to_ptr.vmem [resolvable:$true] %s252
          %258 = dma.hbm_to_vmem [thread:$0]  %s1, 1024, %s253, [#allocation6], 512, 512, 32
        $region20: #{tpu_custom_call.1} parent=11 // pred_fallthru
          _
        // Predicated region
        $region21: #{tpu_custom_call.1} parent=11 // pred_check
          %p259 = pneg %p97
        $region22: #{tpu_custom_call.1} parent=11 // pred_check_branch
          %261 = sbr.rel (%p259) target = $region24
        $region23: #{tpu_custom_call.1} parent=11 // pred_region
          %s263 = ssub.s32 128, 128
          %264 = vsyncadd [#allocation8], %s263
          %s266 = sshll.u32 [#allocation7], 4
          %s267 = int_to_ptr.vmem [resolvable:$true] %s266
          %269 = dma.hbm_to_vmem [thread:$0]  %s2, 128, %s267, [#allocation8]
        $region24: #{tpu_custom_call.1} parent=11 // pred_fallthru
          _
        // Predicated region
        $region25: #{tpu_custom_call.1} parent=11 // pred_check
          %p270 = pneg %p196
        $region26: #{tpu_custom_call.1} parent=11 // pred_check_branch
          %272 = sbr.rel (%p270) target = $region28
        $region27: #{tpu_custom_call.1} parent=11 // pred_region
          _
        $region28: #{tpu_custom_call.1} parent=11 // pred_fallthru
          _
      $region12: #{tpu_custom_call.1} parent=5 // pred_fallthru
        _
      %p273 = scmp.lt.s32.totalorder %s17, 4
      // Predicated region
      $region29: #{tpu_custom_call.1} parent=5 // pred_check
        %p274 = pneg %p273
      $region30: #{tpu_custom_call.1} parent=5 // pred_check_branch
        %276 = sbr.rel (%p274) target = $region32
      $region31: #{tpu_custom_call.1} parent=5 // pred_region
        // Predicated region
        $region33: #{tpu_custom_call.1} parent=31 // pred_check
          %p277 = pneg %p117
        $region34: #{tpu_custom_call.1} parent=31 // pred_check_branch
          %279 = sbr.rel (%p277) target = $region36
        $region35: #{tpu_custom_call.1} parent=31 // pred_region
          %s280 = sand.u32 %s17, 1
          %s281 = scalar_lea.sflag [#allocation6], %s280
          %s282 = sand.u32 %s107, 1
          %s283 = smul.addr %s282, 1024
          %s284 = scalar_lea.vmem [#allocation9], %s283
          %s285 = smul.u32 2, %s25
          %s287 = ssub.s32 16384, 16384
          %288 = vsyncadd %s281, %s287
          %s289 = smul.addr %s285, 64
          %s290 = scalar_lea.hbm %s3, %s289
          %s291 = sshll.u32 %s284, 4
          %s292 = int_to_ptr.vmem [resolvable:$true] %s291
          %297 = dma.hbm_to_vmem [thread:$0]  %s290, 16384, %s292, %s281, 512, 128, 8
        $region36: #{tpu_custom_call.1} parent=31 // pred_fallthru
          _
        // Predicated region
        $region37: #{tpu_custom_call.1} parent=31 // pred_check
          %p298 = pneg %p143
        $region38: #{tpu_custom_call.1} parent=31 // pred_check_branch
          %300 = sbr.rel (%p298) target = $region40
        $region39: #{tpu_custom_call.1} parent=31 // pred_region
          %s301 = sand.u32 %s17, 1
          %s302 = scalar_lea.sflag [#allocation6], %s301
          %s303 = sand.u32 %s133, 1
          %s304 = smul.addr %s303, 2
          %s305 = scalar_lea.vmem [#allocation10], %s304
          %s306 = smul.u32 2, %s25
          %s308 = ssub.s32 32, 32
          %309 = vsyncadd %s302, %s308
          %s310 = smul.addr %s306, 16
          %s311 = scalar_lea.hbm %s4, %s310
          %s313 = sshll.u32 %s305, 4
          %s314 = int_to_ptr.vmem [resolvable:$true] %s313
          %316 = dma.hbm_to_vmem [thread:$0]  %s311, 32, %s314, %s302
        $region40: #{tpu_custom_call.1} parent=31 // pred_fallthru
          _
        // Predicated region
        $region41: #{tpu_custom_call.1} parent=31 // pred_check
          %p317 = pneg %p169
        $region42: #{tpu_custom_call.1} parent=31 // pred_check_branch
          %319 = sbr.rel (%p317) target = $region44
        $region43: #{tpu_custom_call.1} parent=31 // pred_region
          %s320 = sand.u32 %s17, 1
          %s321 = scalar_lea.sflag [#allocation6], %s320
          %s322 = sand.u32 %s159, 1
          %s323 = smul.addr %s322, 2
          %s324 = scalar_lea.vmem [#allocation11], %s323
          %s325 = smul.u32 2, %s25
          %s327 = ssub.s32 32, 32
          %328 = vsyncadd %s321, %s327
          %s329 = smul.addr %s325, 16
          %s330 = scalar_lea.hbm %s5, %s329
          %s332 = sshll.u32 %s324, 4
          %s333 = int_to_ptr.vmem [resolvable:$true] %s332
          %335 = dma.hbm_to_vmem [thread:$0]  %s330, 32, %s333, %s321
        $region44: #{tpu_custom_call.1} parent=31 // pred_fallthru
          _
      $region32: #{tpu_custom_call.1} parent=5 // pred_fallthru
        _
      %p336 = scmp.le.s32.totalorder 1, %s17
      %p337 = scmp.lt.s32.totalorder %s17, 5
      %p338 = pnand %p336, %p337
      %p339 = pneg %p338
      // Predicated region
      $region45: #{tpu_custom_call.1} parent=5 // pred_check
        _
      $region46: #{tpu_custom_call.1} parent=5 // pred_check_branch
        %341 = sbr.rel (%p338) target = $region48
      $region47: #{tpu_custom_call.1} parent=5 // pred_region
        %s342 = ssub.s32 %s17, 1
        // Predicated region
        $region49: #{tpu_custom_call.1} parent=47 // pred_check
          %p343 = pneg %p76
        $region50: #{tpu_custom_call.1} parent=47 // pred_check_branch
          %345 = sbr.rel (%p343) target = $region52
        $region51: #{tpu_custom_call.1} parent=47 // pred_region
          %346 = dma.done [#allocation6], 1024
        $region52: #{tpu_custom_call.1} parent=47 // pred_fallthru
          _
        // Predicated region
        $region53: #{tpu_custom_call.1} parent=47 // pred_check
          %p347 = pneg %p97
        $region54: #{tpu_custom_call.1} parent=47 // pred_check_branch
          %349 = sbr.rel (%p347) target = $region56
        $region55: #{tpu_custom_call.1} parent=47 // pred_region
          %350 = dma.done [#allocation8], 128
        $region56: #{tpu_custom_call.1} parent=47 // pred_fallthru
          _
        %s351 = sand.u32 %s22, 1
        %s352 = scalar_lea.sflag [#allocation6], %s351
        %s353 = sand.u32 %s110, 1
        %s354 = smul.addr %s353, 1024
        %s355 = scalar_lea.vmem [#allocation9], %s354
        // Predicated region
        $region57: #{tpu_custom_call.1} parent=47 // pred_check
          %p356 = pneg %p123
        $region58: #{tpu_custom_call.1} parent=47 // pred_check_branch
          %358 = sbr.rel (%p356) target = $region60
        $region59: #{tpu_custom_call.1} parent=47 // pred_region
          %359 = dma.done %s352, 16384
        $region60: #{tpu_custom_call.1} parent=47 // pred_fallthru
          _
        %s360 = sand.u32 %s22, 1
        %s361 = scalar_lea.sflag [#allocation6], %s360
        %s362 = sand.u32 %s136, 1
        %s363 = smul.addr %s362, 2
        %s364 = scalar_lea.vmem [#allocation10], %s363
        // Predicated region
        $region61: #{tpu_custom_call.1} parent=47 // pred_check
          %p365 = pneg %p149
        $region62: #{tpu_custom_call.1} parent=47 // pred_check_branch
          %367 = sbr.rel (%p365) target = $region64
        $region63: #{tpu_custom_call.1} parent=47 // pred_region
          %368 = dma.done %s361, 32
        $region64: #{tpu_custom_call.1} parent=47 // pred_fallthru
          _
        %s369 = sand.u32 %s22, 1
        %s370 = scalar_lea.sflag [#allocation6], %s369
        %s371 = sand.u32 %s162, 1
        %s372 = smul.addr %s371, 2
        %s373 = scalar_lea.vmem [#allocation11], %s372
        // Predicated region
        $region65: #{tpu_custom_call.1} parent=47 // pred_check
          %p374 = pneg %p175
        $region66: #{tpu_custom_call.1} parent=47 // pred_check_branch
          %376 = sbr.rel (%p374) target = $region68
        $region67: #{tpu_custom_call.1} parent=47 // pred_region
          %377 = dma.done %s370, 32
        $region68: #{tpu_custom_call.1} parent=47 // pred_fallthru
          _
        %s378 = smul.u32 8, %s26
        %p379 = scmp.lt.s32.totalorder %s378, 7
        %s380 = scalar_select %p379, %s378, 7
        %s381 = smul.addr %s380, 4
        %s382 = scalar_lea.vmem %s0, %s381
        %p383 = pneg %p55
        %p384 = pneg %p52
        %p385 = pneg %p76
        %p386 = pneg %p73
        %p387 = pneg %p97
        %p388 = pneg %p94
        %s389 = sand.u32 %s22, 1
        %s390 = scalar_lea.sflag [#allocation6], %s389
        %s391 = sand.u32 %s110, 1
        %s392 = smul.addr %s391, 1024
        %s393 = scalar_lea.vmem [#allocation9], %s392
        %p394 = pneg %p123
        %p395 = pneg %p120
        %s396 = sand.u32 %s22, 1
        %s397 = scalar_lea.sflag [#allocation6], %s396
        %s398 = sand.u32 %s136, 1
        %s399 = smul.addr %s398, 2
        %s400 = scalar_lea.vmem [#allocation10], %s399
        %p401 = pneg %p149
        %p402 = pneg %p146
        %s403 = sand.u32 %s22, 1
        %s404 = scalar_lea.sflag [#allocation6], %s403
        %s405 = sand.u32 %s162, 1
        %s406 = smul.addr %s405, 2
        %s407 = scalar_lea.vmem [#allocation11], %s406
        %p408 = pneg %p175
        %p409 = pneg %p172
        %p410 = pneg %p196
        %p411 = pneg %p193
        %p412 = pneg %p222
        %p413 = pneg %p219
        %s414 = smul.u32 8, %s26
        %p415 = scmp.lt.s32.totalorder %s414, 7
        %s416 = scalar_select %p415, %s414, 7
        %s417 = smul.addr %s416, 8
        %s418 = scalar_lea.vmem %s7, %s417
        %s419 = smul.u32 8, %s26
        %p420 = scmp.lt.s32.totalorder %s419, 7
        %s421 = scalar_select %p420, %s419, 7
        %s422 = smul.addr %s421, 4
        %s423 = scalar_lea.vmem %s0, %s422
        %s424 = smul.u32 8, %s26
        %s425 = smul.u32 2, %s27
        %s426 = smul.u32 2, %s27
        %s427 = smul.u32 2, %s27
        %s428 = smul.u32 8, %s26
        %p429 = scmp.lt.s32.totalorder %s428, 7
        %s430 = scalar_select %p429, %s428, 7
        %s431 = smul.addr %s430, 8
        %s432 = scalar_lea.vmem %s7, %s431
        %s433 = smul.u32 8, %s26
        %p435 = scmp.eq.s32.totalorder %s27, 0
        // Predicated region
        $region69: #{tpu_custom_call.1} parent=47 // pred_check
          %p436 = pneg %p435
        $region70: #{tpu_custom_call.1} parent=47 // pred_check_branch
          %438 = sbr.rel (%p436) target = $region72
        $region71: #{tpu_custom_call.1} parent=47 // pred_region
          %v439 = vld [vmem:[%s423] sm:$0xf]
          %v440 = vld [vmem:[%s423 + $0x4] sm:$0xf]
          %v441 = vld [vmem:[%s423 + $0x8] sm:$0xf]
          %v442 = vld [vmem:[%s423 + $0xc] sm:$0xf]
          %v443 = vld [vmem:[%s423 + $0x10] sm:$0xf]
          %v444 = vld [vmem:[%s423 + $0x14] sm:$0xf]
          %v445 = vld [vmem:[%s423 + $0x18] sm:$0xf]
          %v446 = vld [vmem:[%s423 + $0x1c] sm:$0xf]
          %v447 = vld [vmem:[#allocation5] sm:$0xff]
          %v448 = vld [vmem:[#allocation5 + $0x8] sm:$0xff]
          %v449 = vld [vmem:[#allocation5 + $0x10] sm:$0xff]
          %v450 = vld [vmem:[#allocation5 + $0x18] sm:$0xff]
          %v451 = vld [vmem:[#allocation5 + $0x20] sm:$0xff]
          %v452 = vld [vmem:[#allocation5 + $0x28] sm:$0xff]
          %v453 = vld [vmem:[#allocation5 + $0x30] sm:$0xff]
          %v454 = vld [vmem:[#allocation5 + $0x38] sm:$0xff]
          %v455 = vld [vmem:[#allocation7] sm:$0xff]
          %v457 = vlaneseq
          %v458 = vshrl.u32 %v457, 7
          %v459 = vsub.s32 0, %v458
          %v460 = vrot.slane %v455, %v459
          %v461 = vlaneseq
          %v462 = vshrl.u32 %v461, 7
          %v463 = vsub.s32 1, %v462
          %v464 = vrot.slane %v455, %v463
          %v465 = vlaneseq
          %v466 = vshrl.u32 %v465, 7
          %v467 = vsub.s32 2, %v466
          %v468 = vrot.slane %v455, %v467
          %v469 = vlaneseq
          %v470 = vshrl.u32 %v469, 7
          %v471 = vsub.s32 3, %v470
          %v472 = vrot.slane %v455, %v471
          %v473 = vlaneseq
          %v474 = vshrl.u32 %v473, 7
          %v475 = vsub.s32 4, %v474
          %v476 = vrot.slane %v455, %v475
          %v477 = vlaneseq
          %v478 = vshrl.u32 %v477, 7
          %v479 = vsub.s32 5, %v478
          %v480 = vrot.slane %v455, %v479
          %v481 = vlaneseq
          %v482 = vshrl.u32 %v481, 7
          %v483 = vsub.s32 6, %v482
          %v484 = vrot.slane %v455, %v483
          %v485 = vlaneseq
          %v486 = vshrl.u32 %v485, 7
          %v487 = vsub.s32 7, %v486
          %v488 = vrot.slane %v455, %v487
          %v505 = vunpack.c.l.b16 %v439
          %v506 = vunpack.c.l.b16 %v440
          %v507 = vunpack.c.l.b16 %v441
          %v508 = vunpack.c.l.b16 %v442
          %v509 = vunpack.c.l.b16 %v443
          %v510 = vunpack.c.l.b16 %v444
          %v511 = vunpack.c.l.b16 %v445
          %v512 = vunpack.c.l.b16 %v446
          %v513 = vpack.c.b16 %v506, %v505
          %v514 = vpack.c.b16 %v508, %v507
          %v515 = vpack.c.b16 %v510, %v509
          %v516 = vpack.c.b16 %v512, %v511
          %v525 = vunpack.c.l.b16 %v447
          %v526 = vunpack.c.h.b16 %v447
          %v527 = vunpack.c.l.b16 %v448
          %v528 = vunpack.c.h.b16 %v448
          %v529 = vunpack.c.l.b16 %v449
          %v530 = vunpack.c.h.b16 %v449
          %v531 = vunpack.c.l.b16 %v450
          %v532 = vunpack.c.h.b16 %v450
          %v533 = vunpack.c.l.b16 %v451
          %v534 = vunpack.c.h.b16 %v451
          %v535 = vunpack.c.l.b16 %v452
          %v536 = vunpack.c.h.b16 %v452
          %v537 = vunpack.c.l.b16 %v453
          %v538 = vunpack.c.h.b16 %v453
          %v539 = vunpack.c.l.b16 %v454
          %v540 = vunpack.c.h.b16 %v454
          %v541 = vpack.c.b16 %v533, %v525
          %v542 = vpack.c.b16 %v534, %v526
          %v543 = vpack.c.b16 %v535, %v527
          %v544 = vpack.c.b16 %v536, %v528
          %v545 = vpack.c.b16 %v537, %v529
          %v546 = vpack.c.b16 %v538, %v530
          %v547 = vpack.c.b16 %v539, %v531
          %v548 = vpack.c.b16 %v540, %v532
          %vm557 = vcmask 130048
          %v559 = vsel %vm557, %v513, 0
          %v562 = vsel %vm557, %v514, 0
          %v565 = vsel %vm557, %v515, 0
          %v568 = vsel %vm557, %v516, 0
          %570 = vmatprep.subr.bf16.mxu0 %v542
          %571 = vmatpush1.bf16.msra.mxu0 %v541
          %572 = vmatprep.subr.bf16.mxu0 0
          %573 = vmatpush1.bf16.msra.mxu0 0
          %574 = vmatprep.subr.bf16.mxu0 0
          %575 = vmatpush1.bf16.msra.mxu0 0
          %576 = vmatprep.subr.bf16.mxu0 0
          %577 = vmatpush1.bf16.msra.mxu0 0
          %578 = vmatprep.subr.bf16.mxu0 0
          %579 = vmatpush1.bf16.msra.mxu0 0
          %580 = vmatprep.subr.bf16.mxu0 0
          %581 = vmatpush1.bf16.msra.mxu0 0
          %582 = vmatprep.subr.bf16.mxu0 0
          %583 = vmatpush1.bf16.msra.mxu0 0
          %584 = vmatprep.subr.bf16.mxu0 0
          %585 = vmatpush1.bf16.msra.mxu0 0
          %586 = vmatprep.subr.bf16.mxu0 0
          %587 = vmatpush1.bf16.msra.mxu0 0
          %588 = vmatprep.subr.bf16.mxu0 0
          %589 = vmatpush1.bf16.msra.mxu0 0
          %590 = vmatprep.subr.bf16.mxu0 0
          %591 = vmatpush1.bf16.msra.mxu0 0
          %592 = vmatprep.subr.bf16.mxu0 0
          %593 = vmatpush1.bf16.msra.mxu0 0
          %594 = vmatprep.subr.bf16.mxu0 0
          %595 = vmatpush1.bf16.msra.mxu0 0
          %596 = vmatprep.subr.bf16.mxu0 0
          %597 = vmatpush1.bf16.msra.mxu0 0
          %598 = vmatprep.subr.bf16.mxu0 0
          %599 = vmatpush1.bf16.msra.mxu0 0
          %600 = vmatprep.subr.bf16.mxu0 0
          %601 = vmatpush1.bf16.msra.mxu0 0
          %602 = vmatprep.mubr.bf16.mxu0 0
          %603 = vmatmul.mubr.bf16.gmra.mrb[0].mxu0 %v559
          %v604 = vpop.f32.mrb[0].mxu0
          %v605 = vadd.f32 %v460, %v604
          %v606 = vpop.f32.mrb[0].mxu0
          %v607 = vadd.f32 %v464, %v606
          %v608 = vpop.f32.mrb[0].mxu0
          %v609 = vadd.f32 %v460, %v608
          %v610 = vpop.f32.mrb[0].mxu0
          %v611 = vadd.f32 %v464, %v610
          %612 = vmatprep.mubr.bf16.mxu0 0
          %613 = vmatmul.mubr.bf16.gmra.mrb[0].mxu0 %v562
          %v614 = vpop.f32.mrb[0].mxu0
          %v615 = vadd.f32 %v460, %v614
          %v616 = vpop.f32.mrb[0].mxu0
          %v617 = vadd.f32 %v464, %v616
          %v618 = vpop.f32.mrb[0].mxu0
          %v619 = vadd.f32 %v460, %v618
          %v620 = vpop.f32.mrb[0].mxu0
          %v621 = vadd.f32 %v464, %v620
          %622 = vmatprep.mubr.bf16.mxu0 0
          %623 = vmatmul.mubr.bf16.gmra.mrb[0].mxu0 %v565
          %v624 = vpop.f32.mrb[0].mxu0
          %v625 = vadd.f32 %v460, %v624
          %v626 = vpop.f32.mrb[0].mxu0
          %v627 = vadd.f32 %v464, %v626
          %v628 = vpop.f32.mrb[0].mxu0
          %v629 = vadd.f32 %v460, %v628
          %v630 = vpop.f32.mrb[0].mxu0
          %v631 = vadd.f32 %v464, %v630
          %632 = vmatprep.mubr.bf16.mxu0 0
          %633 = vmatmul.mubr.bf16.gmra.mrb[0].mxu0 %v568
          %v634 = vpop.f32.mrb[0].mxu0
          %v635 = vadd.f32 %v460, %v634
          %v636 = vpop.f32.mrb[0].mxu0
          %v637 = vadd.f32 %v464, %v636
          %v638 = vpop.f32.mrb[0].mxu0
          %v639 = vadd.f32 %v460, %v638
          %v640 = vpop.f32.mrb[0].mxu0
          %v641 = vadd.f32 %v464, %v640
          %642 = vdwg.mxu0
          %643 = vmatprep.subr.bf16.mxu0 %v544
          %644 = vmatpush1.bf16.msra.mxu0 %v543
          %645 = vmatprep.subr.bf16.mxu0 0
          %646 = vmatpush1.bf16.msra.mxu0 0
          %647 = vmatprep.subr.bf16.mxu0 0
          %648 = vmatpush1.bf16.msra.mxu0 0
          %649 = vmatprep.subr.bf16.mxu0 0
          %650 = vmatpush1.bf16.msra.mxu0 0
          %651 = vmatprep.subr.bf16.mxu0 0
          %652 = vmatpush1.bf16.msra.mxu0 0
          %653 = vmatprep.subr.bf16.mxu0 0
          %654 = vmatpush1.bf16.msra.mxu0 0
          %655 = vmatprep.subr.bf16.mxu0 0
          %656 = vmatpush1.bf16.msra.mxu0 0
          %657 = vmatprep.subr.bf16.mxu0 0
          %658 = vmatpush1.bf16.msra.mxu0 0
          %659 = vmatprep.subr.bf16.mxu0 0
          %660 = vmatpush1.bf16.msra.mxu0 0
          %661 = vmatprep.subr.bf16.mxu0 0
          %662 = vmatpush1.bf16.msra.mxu0 0
          %663 = vmatprep.subr.bf16.mxu0 0
          %664 = vmatpush1.bf16.msra.mxu0 0
          %665 = vmatprep.subr.bf16.mxu0 0
          %666 = vmatpush1.bf16.msra.mxu0 0
          %667 = vmatprep.subr.bf16.mxu0 0
          %668 = vmatpush1.bf16.msra.mxu0 0
          %669 = vmatprep.subr.bf16.mxu0 0
          %670 = vmatpush1.bf16.msra.mxu0 0
          %671 = vmatprep.subr.bf16.mxu0 0
          %672 = vmatpush1.bf16.msra.mxu0 0
          %673 = vmatprep.subr.bf16.mxu0 0
          %674 = vmatpush1.bf16.msra.mxu0 0
          %675 = vmatprep.mubr.bf16.mxu0 0
          %676 = vmatmul.mubr.bf16.gmra.mrb[0].mxu0 %v559
          %v677 = vpop.f32.mrb[0].mxu0
          %v678 = vadd.f32 %v468, %v677
          %v679 = vpop.f32.mrb[0].mxu0
          %v680 = vadd.f32 %v472, %v679
          %v681 = vpop.f32.mrb[0].mxu0
          %v682 = vadd.f32 %v468, %v681
          %v683 = vpop.f32.mrb[0].mxu0
          %v684 = vadd.f32 %v472, %v683
          %685 = vmatprep.mubr.bf16.mxu0 0
          %686 = vmatmul.mubr.bf16.gmra.mrb[0].mxu0 %v562
          %v687 = vpop.f32.mrb[0].mxu0
          %v688 = vadd.f32 %v468, %v687
          %v689 = vpop.f32.mrb[0].mxu0
          %v690 = vadd.f32 %v472, %v689
          %v691 = vpop.f32.mrb[0].mxu0
          %v692 = vadd.f32 %v468, %v691
          %v693 = vpop.f32.mrb[0].mxu0
          %v694 = vadd.f32 %v472, %v693
          %695 = vmatprep.mubr.bf16.mxu0 0
          %696 = vmatmul.mubr.bf16.gmra.mrb[0].mxu0 %v565
          %v697 = vpop.f32.mrb[0].mxu0
          %v698 = vadd.f32 %v468, %v697
          %v699 = vpop.f32.mrb[0].mxu0
          %v700 = vadd.f32 %v472, %v699
          %v701 = vpop.f32.mrb[0].mxu0
          %v702 = vadd.f32 %v468, %v701
          %v703 = vpop.f32.mrb[0].mxu0
          %v704 = vadd.f32 %v472, %v703
          %705 = vmatprep.mubr.bf16.mxu0 0
          %706 = vmatmul.mubr.bf16.gmra.mrb[0].mxu0 %v568
          %v707 = vpop.f32.mrb[0].mxu0
          %v708 = vadd.f32 %v468, %v707
          %v709 = vpop.f32.mrb[0].mxu0
          %v710 = vadd.f32 %v472, %v709
          %v711 = vpop.f32.mrb[0].mxu0
          %v712 = vadd.f32 %v468, %v711
          %v713 = vpop.f32.mrb[0].mxu0
          %v714 = vadd.f32 %v472, %v713
          %715 = vdwg.mxu0
          %716 = vmatprep.subr.bf16.mxu0 %v546
          %717 = vmatpush1.bf16.msra.mxu0 %v545
          %718 = vmatprep.subr.bf16.mxu0 0
          %719 = vmatpush1.bf16.msra.mxu0 0
          %720 = vmatprep.subr.bf16.mxu0 0
          %721 = vmatpush1.bf16.msra.mxu0 0
          %722 = vmatprep.subr.bf16.mxu0 0
          %723 = vmatpush1.bf16.msra.mxu0 0
          %724 = vmatprep.subr.bf16.mxu0 0
          %725 = vmatpush1.bf16.msra.mxu0 0
          %726 = vmatprep.subr.bf16.mxu0 0
          %727 = vmatpush1.bf16.msra.mxu0 0
          %728 = vmatprep.subr.bf16.mxu0 0
          %729 = vmatpush1.bf16.msra.mxu0 0
          %730 = vmatprep.subr.bf16.mxu0 0
          %731 = vmatpush1.bf16.msra.mxu0 0
          %732 = vmatprep.subr.bf16.mxu0 0
          %733 = vmatpush1.bf16.msra.mxu0 0
          %734 = vmatprep.subr.bf16.mxu0 0
          %735 = vmatpush1.bf16.msra.mxu0 0
          %736 = vmatprep.subr.bf16.mxu0 0
          %737 = vmatpush1.bf16.msra.mxu0 0
          %738 = vmatprep.subr.bf16.mxu0 0
          %739 = vmatpush1.bf16.msra.mxu0 0
          %740 = vmatprep.subr.bf16.mxu0 0
          %741 = vmatpush1.bf16.msra.mxu0 0
          %742 = vmatprep.subr.bf16.mxu0 0
          %743 = vmatpush1.bf16.msra.mxu0 0
          %744 = vmatprep.subr.bf16.mxu0 0
          %745 = vmatpush1.bf16.msra.mxu0 0
          %746 = vmatprep.subr.bf16.mxu0 0
          %747 = vmatpush1.bf16.msra.mxu0 0
          %748 = vmatprep.mubr.bf16.mxu0 0
          %749 = vmatmul.mubr.bf16.gmra.mrb[0].mxu0 %v559
          %v750 = vpop.f32.mrb[0].mxu0
          %v751 = vadd.f32 %v476, %v750
          %v752 = vpop.f32.mrb[0].mxu0
          %v753 = vadd.f32 %v480, %v752
          %v754 = vpop.f32.mrb[0].mxu0
          %v755 = vadd.f32 %v476, %v754
          %v756 = vpop.f32.mrb[0].mxu0
          %v757 = vadd.f32 %v480, %v756
          %758 = vmatprep.mubr.bf16.mxu0 0
          %759 = vmatmul.mubr.bf16.gmra.mrb[0].mxu0 %v562
          %v760 = vpop.f32.mrb[0].mxu0
          %v761 = vadd.f32 %v476, %v760
          %v762 = vpop.f32.mrb[0].mxu0
          %v763 = vadd.f32 %v480, %v762
          %v764 = vpop.f32.mrb[0].mxu0
          %v765 = vadd.f32 %v476, %v764
          %v766 = vpop.f32.mrb[0].mxu0
          %v767 = vadd.f32 %v480, %v766
          %768 = vmatprep.mubr.bf16.mxu0 0
          %769 = vmatmul.mubr.bf16.gmra.mrb[0].mxu0 %v565
          %v770 = vpop.f32.mrb[0].mxu0
          %v771 = vadd.f32 %v476, %v770
          %v772 = vpop.f32.mrb[0].mxu0
          %v773 = vadd.f32 %v480, %v772
          %v774 = vpop.f32.mrb[0].mxu0
          %v775 = vadd.f32 %v476, %v774
          %v776 = vpop.f32.mrb[0].mxu0
          %v777 = vadd.f32 %v480, %v776
          %778 = vmatprep.mubr.bf16.mxu0 0
          %779 = vmatmul.mubr.bf16.gmra.mrb[0].mxu0 %v568
          %v780 = vpop.f32.mrb[0].mxu0
          %v781 = vadd.f32 %v476, %v780
          %v782 = vpop.f32.mrb[0].mxu0
          %v783 = vadd.f32 %v480, %v782
          %v784 = vpop.f32.mrb[0].mxu0
          %v785 = vadd.f32 %v476, %v784
          %v786 = vpop.f32.mrb[0].mxu0
          %v787 = vadd.f32 %v480, %v786
          %788 = vdwg.mxu0
          %789 = vmatprep.subr.bf16.mxu0 %v548
          %790 = vmatpush1.bf16.msra.mxu0 %v547
          %791 = vmatprep.subr.bf16.mxu0 0
          %792 = vmatpush1.bf16.msra.mxu0 0
          %793 = vmatprep.subr.bf16.mxu0 0
          %794 = vmatpush1.bf16.msra.mxu0 0
          %795 = vmatprep.subr.bf16.mxu0 0
          %796 = vmatpush1.bf16.msra.mxu0 0
          %797 = vmatprep.subr.bf16.mxu0 0
          %798 = vmatpush1.bf16.msra.mxu0 0
          %799 = vmatprep.subr.bf16.mxu0 0
          %800 = vmatpush1.bf16.msra.mxu0 0
          %801 = vmatprep.subr.bf16.mxu0 0
          %802 = vmatpush1.bf16.msra.mxu0 0
          %803 = vmatprep.subr.bf16.mxu0 0
          %804 = vmatpush1.bf16.msra.mxu0 0
          %805 = vmatprep.subr.bf16.mxu0 0
          %806 = vmatpush1.bf16.msra.mxu0 0
          %807 = vmatprep.subr.bf16.mxu0 0
          %808 = vmatpush1.bf16.msra.mxu0 0
          %809 = vmatprep.subr.bf16.mxu0 0
          %810 = vmatpush1.bf16.msra.mxu0 0
          %811 = vmatprep.subr.bf16.mxu0 0
          %812 = vmatpush1.bf16.msra.mxu0 0
          %813 = vmatprep.subr.bf16.mxu0 0
          %814 = vmatpush1.bf16.msra.mxu0 0
          %815 = vmatprep.subr.bf16.mxu0 0
          %816 = vmatpush1.bf16.msra.mxu0 0
          %817 = vmatprep.subr.bf16.mxu0 0
          %818 = vmatpush1.bf16.msra.mxu0 0
          %819 = vmatprep.subr.bf16.mxu0 0
          %820 = vmatpush1.bf16.msra.mxu0 0
          %821 = vmatprep.mubr.bf16.mxu0 0
          %822 = vmatmul.mubr.bf16.gmra.mrb[0].mxu0 %v559
          %v823 = vpop.f32.mrb[0].mxu0
          %v824 = vadd.f32 %v484, %v823
          %v825 = vpop.f32.mrb[0].mxu0
          %v826 = vadd.f32 %v488, %v825
          %v827 = vpop.f32.mrb[0].mxu0
          %v828 = vadd.f32 %v484, %v827
          %v829 = vpop.f32.mrb[0].mxu0
          %v830 = vadd.f32 %v488, %v829
          %831 = vmatprep.mubr.bf16.mxu0 0
          %832 = vmatmul.mubr.bf16.gmra.mrb[0].mxu0 %v562
          %v833 = vpop.f32.mrb[0].mxu0
          %v834 = vadd.f32 %v484, %v833
          %v835 = vpop.f32.mrb[0].mxu0
          %v836 = vadd.f32 %v488, %v835
          %v837 = vpop.f32.mrb[0].mxu0
          %v838 = vadd.f32 %v484, %v837
          %v839 = vpop.f32.mrb[0].mxu0
          %v840 = vadd.f32 %v488, %v839
          %841 = vmatprep.mubr.bf16.mxu0 0
          %842 = vmatmul.mubr.bf16.gmra.mrb[0].mxu0 %v565
          %v843 = vpop.f32.mrb[0].mxu0
          %v844 = vadd.f32 %v484, %v843
          %v845 = vpop.f32.mrb[0].mxu0
          %v846 = vadd.f32 %v488, %v845
          %v847 = vpop.f32.mrb[0].mxu0
          %v848 = vadd.f32 %v484, %v847
          %v849 = vpop.f32.mrb[0].mxu0
          %v850 = vadd.f32 %v488, %v849
          %851 = vmatprep.mubr.bf16.mxu0 0
          %852 = vmatmul.mubr.bf16.gmra.mrb[0].mxu0 %v568
          %v853 = vpop.f32.mrb[0].mxu0
          %v854 = vadd.f32 %v484, %v853
          %v855 = vpop.f32.mrb[0].mxu0
          %v856 = vadd.f32 %v488, %v855
          %v857 = vpop.f32.mrb[0].mxu0
          %v858 = vadd.f32 %v484, %v857
          %v859 = vpop.f32.mrb[0].mxu0
          %v860 = vadd.f32 %v488, %v859
          %861 = vdwg.mxu0
          %v862 = vmax.f32 %v605, 0.0
          %v863 = vmax.f32 %v607, 0.0
          %v864 = vmax.f32 %v678, 0.0
          %v865 = vmax.f32 %v680, 0.0
          %v866 = vmax.f32 %v751, 0.0
          %v867 = vmax.f32 %v753, 0.0
          %v868 = vmax.f32 %v824, 0.0
          %v869 = vmax.f32 %v826, 0.0
          %v870 = vmax.f32 %v609, 0.0
          %v871 = vmax.f32 %v611, 0.0
          %v872 = vmax.f32 %v682, 0.0
          %v873 = vmax.f32 %v684, 0.0
          %v874 = vmax.f32 %v755, 0.0
          %v875 = vmax.f32 %v757, 0.0
          %v876 = vmax.f32 %v828, 0.0
          %v877 = vmax.f32 %v830, 0.0
          %v878 = vmax.f32 %v615, 0.0
          %v879 = vmax.f32 %v617, 0.0
          %v880 = vmax.f32 %v688, 0.0
          %v881 = vmax.f32 %v690, 0.0
          %v882 = vmax.f32 %v761, 0.0
          %v883 = vmax.f32 %v763, 0.0
          %v884 = vmax.f32 %v834, 0.0
          %v885 = vmax.f32 %v836, 0.0
          %v886 = vmax.f32 %v619, 0.0
          %v887 = vmax.f32 %v621, 0.0
          %v888 = vmax.f32 %v692, 0.0
          %v889 = vmax.f32 %v694, 0.0
          %v890 = vmax.f32 %v765, 0.0
          %v891 = vmax.f32 %v767, 0.0
          %v892 = vmax.f32 %v838, 0.0
          %v893 = vmax.f32 %v840, 0.0
          %v894 = vmax.f32 %v625, 0.0
          %v895 = vmax.f32 %v627, 0.0
          %v896 = vmax.f32 %v698, 0.0
          %v897 = vmax.f32 %v700, 0.0
          %v898 = vmax.f32 %v771, 0.0
          %v899 = vmax.f32 %v773, 0.0
          %v900 = vmax.f32 %v844, 0.0
          %v901 = vmax.f32 %v846, 0.0
          %v902 = vmax.f32 %v629, 0.0
          %v903 = vmax.f32 %v631, 0.0
          %v904 = vmax.f32 %v702, 0.0
          %v905 = vmax.f32 %v704, 0.0
          %v906 = vmax.f32 %v775, 0.0
          %v907 = vmax.f32 %v777, 0.0
          %v908 = vmax.f32 %v848, 0.0
          %v909 = vmax.f32 %v850, 0.0
          %v910 = vmax.f32 %v635, 0.0
          %v911 = vmax.f32 %v637, 0.0
          %v912 = vmax.f32 %v708, 0.0
          %v913 = vmax.f32 %v710, 0.0
          %v914 = vmax.f32 %v781, 0.0
          %v915 = vmax.f32 %v783, 0.0
          %v916 = vmax.f32 %v854, 0.0
          %v917 = vmax.f32 %v856, 0.0
          %v918 = vmax.f32 %v639, 0.0
          %v919 = vmax.f32 %v641, 0.0
          %v920 = vmax.f32 %v712, 0.0
          %v921 = vmax.f32 %v714, 0.0
          %v922 = vmax.f32 %v785, 0.0
          %v923 = vmax.f32 %v787, 0.0
          %v924 = vmax.f32 %v858, 0.0
          %v925 = vmax.f32 %v860, 0.0
          %v926 = vpack.c.bf16 %v870, %v862
          %v927 = vpack.c.bf16 %v871, %v863
          %v928 = vpack.c.bf16 %v872, %v864
          %v929 = vpack.c.bf16 %v873, %v865
          %v930 = vpack.c.bf16 %v874, %v866
          %v931 = vpack.c.bf16 %v875, %v867
          %v932 = vpack.c.bf16 %v876, %v868
          %v933 = vpack.c.bf16 %v877, %v869
          %v934 = vpack.c.bf16 %v886, %v878
          %v935 = vpack.c.bf16 %v887, %v879
          %v936 = vpack.c.bf16 %v888, %v880
          %v937 = vpack.c.bf16 %v889, %v881
          %v938 = vpack.c.bf16 %v890, %v882
          %v939 = vpack.c.bf16 %v891, %v883
          %v940 = vpack.c.bf16 %v892, %v884
          %v941 = vpack.c.bf16 %v893, %v885
          %v942 = vpack.c.bf16 %v902, %v894
          %v943 = vpack.c.bf16 %v903, %v895
          %v944 = vpack.c.bf16 %v904, %v896
          %v945 = vpack.c.bf16 %v905, %v897
          %v946 = vpack.c.bf16 %v906, %v898
          %v947 = vpack.c.bf16 %v907, %v899
          %v948 = vpack.c.bf16 %v908, %v900
          %v949 = vpack.c.bf16 %v909, %v901
          %v950 = vpack.c.bf16 %v918, %v910
          %v951 = vpack.c.bf16 %v919, %v911
          %v952 = vpack.c.bf16 %v920, %v912
          %v953 = vpack.c.bf16 %v921, %v913
          %v954 = vpack.c.bf16 %v922, %v914
          %v955 = vpack.c.bf16 %v923, %v915
          %v956 = vpack.c.bf16 %v924, %v916
          %v957 = vpack.c.bf16 %v925, %v917
          %958 = vst [vmem:[#allocation2] sm:$0xff] %v926
          %959 = vst [vmem:[#allocation2 + $0x8] sm:$0xff] %v927
          %960 = vst [vmem:[#allocation2 + $0x10] sm:$0xff] %v928
          %961 = vst [vmem:[#allocation2 + $0x18] sm:$0xff] %v929
          %962 = vst [vmem:[#allocation2 + $0x20] sm:$0xff] %v930
          %963 = vst [vmem:[#allocation2 + $0x28] sm:$0xff] %v931
          %964 = vst [vmem:[#allocation2 + $0x30] sm:$0xff] %v932
          %965 = vst [vmem:[#allocation2 + $0x38] sm:$0xff] %v933
          %966 = vst [vmem:[#allocation2 + $0x40] sm:$0xff] %v934
          %967 = vst [vmem:[#allocation2 + $0x48] sm:$0xff] %v935
          %968 = vst [vmem:[#allocation2 + $0x50] sm:$0xff] %v936
          %969 = vst [vmem:[#allocation2 + $0x58] sm:$0xff] %v937
          %970 = vst [vmem:[#allocation2 + $0x60] sm:$0xff] %v938
          %971 = vst [vmem:[#allocation2 + $0x68] sm:$0xff] %v939
          %972 = vst [vmem:[#allocation2 + $0x70] sm:$0xff] %v940
          %973 = vst [vmem:[#allocation2 + $0x78] sm:$0xff] %v941
          %974 = vst [vmem:[#allocation2 + $0x80] sm:$0xff] %v942
          %975 = vst [vmem:[#allocation2 + $0x88] sm:$0xff] %v943
          %976 = vst [vmem:[#allocation2 + $0x90] sm:$0xff] %v944
          %977 = vst [vmem:[#allocation2 + $0x98] sm:$0xff] %v945
          %978 = vst [vmem:[#allocation2 + $0xa0] sm:$0xff] %v946
          %979 = vst [vmem:[#allocation2 + $0xa8] sm:$0xff] %v947
          %980 = vst [vmem:[#allocation2 + $0xb0] sm:$0xff] %v948
          %981 = vst [vmem:[#allocation2 + $0xb8] sm:$0xff] %v949
          %982 = vst [vmem:[#allocation2 + $0xc0] sm:$0xff] %v950
          %983 = vst [vmem:[#allocation2 + $0xc8] sm:$0xff] %v951
          %984 = vst [vmem:[#allocation2 + $0xd0] sm:$0xff] %v952
          %985 = vst [vmem:[#allocation2 + $0xd8] sm:$0xff] %v953
          %986 = vst [vmem:[#allocation2 + $0xe0] sm:$0xff] %v954
          %987 = vst [vmem:[#allocation2 + $0xe8] sm:$0xff] %v955
          %988 = vst [vmem:[#allocation2 + $0xf0] sm:$0xff] %v956
          %989 = vst [vmem:[#allocation2 + $0xf8] sm:$0xff] %v957
          %vm990 = vcmask 7168
          %991 = vst.msk [vmem:[#allocation3] sm:$0xff] %vm990, 0.0
          %992 = vst.msk [vmem:[#allocation3 + $0x8] sm:$0xff] %vm990, 0.0
          %993 = vst.msk [vmem:[#allocation3 + $0x10] sm:$0xff] %vm990, 0.0
          %994 = vst.msk [vmem:[#allocation3 + $0x18] sm:$0xff] %vm990, 0.0
          %995 = vst.msk [vmem:[#allocation3 + $0x20] sm:$0xff] %vm990, 0.0
          %996 = vst.msk [vmem:[#allocation3 + $0x28] sm:$0xff] %vm990, 0.0
          %997 = vst.msk [vmem:[#allocation3 + $0x30] sm:$0xff] %vm990, 0.0
          %998 = vst.msk [vmem:[#allocation3 + $0x38] sm:$0xff] %vm990, 0.0
        $region72: #{tpu_custom_call.1} parent=47 // pred_fallthru
          _
        %v999 = vld [vmem:[#allocation2] sm:$0xff]
        %v1000 = vld [vmem:[#allocation2 + $0x8] sm:$0xff]
        %v1001 = vld [vmem:[#allocation2 + $0x10] sm:$0xff]
        %v1002 = vld [vmem:[#allocation2 + $0x18] sm:$0xff]
        %v1003 = vld [vmem:[#allocation2 + $0x20] sm:$0xff]
        %v1004 = vld [vmem:[#allocation2 + $0x28] sm:$0xff]
        %v1005 = vld [vmem:[#allocation2 + $0x30] sm:$0xff]
        %v1006 = vld [vmem:[#allocation2 + $0x38] sm:$0xff]
        %v1007 = vld [vmem:[#allocation2 + $0x40] sm:$0xff]
        %v1008 = vld [vmem:[#allocation2 + $0x48] sm:$0xff]
        %v1009 = vld [vmem:[#allocation2 + $0x50] sm:$0xff]
        %v1010 = vld [vmem:[#allocation2 + $0x58] sm:$0xff]
        %v1011 = vld [vmem:[#allocation2 + $0x60] sm:$0xff]
        %v1012 = vld [vmem:[#allocation2 + $0x68] sm:$0xff]
        %v1013 = vld [vmem:[#allocation2 + $0x70] sm:$0xff]
        %v1014 = vld [vmem:[#allocation2 + $0x78] sm:$0xff]
        %v1015 = vld [vmem:[#allocation2 + $0x80] sm:$0xff]
        %v1016 = vld [vmem:[#allocation2 + $0x88] sm:$0xff]
        %v1017 = vld [vmem:[#allocation2 + $0x90] sm:$0xff]
        %v1018 = vld [vmem:[#allocation2 + $0x98] sm:$0xff]
        %v1019 = vld [vmem:[#allocation2 + $0xa0] sm:$0xff]
        %v1020 = vld [vmem:[#allocation2 + $0xa8] sm:$0xff]
        %v1021 = vld [vmem:[#allocation2 + $0xb0] sm:$0xff]
        %v1022 = vld [vmem:[#allocation2 + $0xb8] sm:$0xff]
        %v1023 = vld [vmem:[#allocation2 + $0xc0] sm:$0xff]
        %v1024 = vld [vmem:[#allocation2 + $0xc8] sm:$0xff]
        %v1025 = vld [vmem:[#allocation2 + $0xd0] sm:$0xff]
        %v1026 = vld [vmem:[#allocation2 + $0xd8] sm:$0xff]
        %v1027 = vld [vmem:[#allocation2 + $0xe0] sm:$0xff]
        %v1028 = vld [vmem:[#allocation2 + $0xe8] sm:$0xff]
        %v1029 = vld [vmem:[#allocation2 + $0xf0] sm:$0xff]
        %v1030 = vld [vmem:[#allocation2 + $0xf8] sm:$0xff]
        %v1031 = vld [vmem:[%s355] sm:$0xff]
        %v1032 = vld [vmem:[%s355 + $0x8] sm:$0xff]
        %v1033 = vld [vmem:[%s355 + $0x10] sm:$0xff]
        %v1034 = vld [vmem:[%s355 + $0x18] sm:$0xff]
        %v1035 = vld [vmem:[%s355 + $0x20] sm:$0xff]
        %v1036 = vld [vmem:[%s355 + $0x28] sm:$0xff]
        %v1037 = vld [vmem:[%s355 + $0x30] sm:$0xff]
        %v1038 = vld [vmem:[%s355 + $0x38] sm:$0xff]
        %v1039 = vld [vmem:[%s355 + $0x40] sm:$0xff]
        %v1040 = vld [vmem:[%s355 + $0x48] sm:$0xff]
        %v1041 = vld [vmem:[%s355 + $0x50] sm:$0xff]
        %v1042 = vld [vmem:[%s355 + $0x58] sm:$0xff]
        %v1043 = vld [vmem:[%s355 + $0x60] sm:$0xff]
        %v1044 = vld [vmem:[%s355 + $0x68] sm:$0xff]
        %v1045 = vld [vmem:[%s355 + $0x70] sm:$0xff]
        %v1046 = vld [vmem:[%s355 + $0x78] sm:$0xff]
        %v1047 = vld [vmem:[%s355 + $0x80] sm:$0xff]
        %v1048 = vld [vmem:[%s355 + $0x88] sm:$0xff]
        %v1049 = vld [vmem:[%s355 + $0x90] sm:$0xff]
        %v1050 = vld [vmem:[%s355 + $0x98] sm:$0xff]
        %v1051 = vld [vmem:[%s355 + $0xa0] sm:$0xff]
        %v1052 = vld [vmem:[%s355 + $0xa8] sm:$0xff]
        %v1053 = vld [vmem:[%s355 + $0xb0] sm:$0xff]
        %v1054 = vld [vmem:[%s355 + $0xb8] sm:$0xff]
        %v1055 = vld [vmem:[%s355 + $0xc0] sm:$0xff]
        %v1056 = vld [vmem:[%s355 + $0xc8] sm:$0xff]
        %v1057 = vld [vmem:[%s355 + $0xd0] sm:$0xff]
        %v1058 = vld [vmem:[%s355 + $0xd8] sm:$0xff]
        %v1059 = vld [vmem:[%s355 + $0xe0] sm:$0xff]
        %v1060 = vld [vmem:[%s355 + $0xe8] sm:$0xff]
        %v1061 = vld [vmem:[%s355 + $0xf0] sm:$0xff]
        %v1062 = vld [vmem:[%s355 + $0xf8] sm:$0xff]
        %v1063 = vld [vmem:[%s355 + $0x100] sm:$0xff]
        %v1064 = vld [vmem:[%s355 + $0x108] sm:$0xff]
        %v1065 = vld [vmem:[%s355 + $0x110] sm:$0xff]
        %v1066 = vld [vmem:[%s355 + $0x118] sm:$0xff]
        %v1067 = vld [vmem:[%s355 + $0x120] sm:$0xff]
        %v1068 = vld [vmem:[%s355 + $0x128] sm:$0xff]
        %v1069 = vld [vmem:[%s355 + $0x130] sm:$0xff]
        %v1070 = vld [vmem:[%s355 + $0x138] sm:$0xff]
        %v1071 = vld [vmem:[%s355 + $0x140] sm:$0xff]
        %v1072 = vld [vmem:[%s355 + $0x148] sm:$0xff]
        %v1073 = vld [vmem:[%s355 + $0x150] sm:$0xff]
        %v1074 = vld [vmem:[%s355 + $0x158] sm:$0xff]
        %v1075 = vld [vmem:[%s355 + $0x160] sm:$0xff]
        %v1076 = vld [vmem:[%s355 + $0x168] sm:$0xff]
        %v1077 = vld [vmem:[%s355 + $0x170] sm:$0xff]
        %v1078 = vld [vmem:[%s355 + $0x178] sm:$0xff]
        %v1079 = vld [vmem:[%s355 + $0x180] sm:$0xff]
        %v1080 = vld [vmem:[%s355 + $0x188] sm:$0xff]
        %v1081 = vld [vmem:[%s355 + $0x190] sm:$0xff]
        %v1082 = vld [vmem:[%s355 + $0x198] sm:$0xff]
        %v1083 = vld [vmem:[%s355 + $0x1a0] sm:$0xff]
        %v1084 = vld [vmem:[%s355 + $0x1a8] sm:$0xff]
        %v1085 = vld [vmem:[%s355 + $0x1b0] sm:$0xff]
        %v1086 = vld [vmem:[%s355 + $0x1b8] sm:$0xff]
        %v1087 = vld [vmem:[%s355 + $0x1c0] sm:$0xff]
        %v1088 = vld [vmem:[%s355 + $0x1c8] sm:$0xff]
        %v1089 = vld [vmem:[%s355 + $0x1d0] sm:$0xff]
        %v1090 = vld [vmem:[%s355 + $0x1d8] sm:$0xff]
        %v1091 = vld [vmem:[%s355 + $0x1e0] sm:$0xff]
        %v1092 = vld [vmem:[%s355 + $0x1e8] sm:$0xff]
        %v1093 = vld [vmem:[%s355 + $0x1f0] sm:$0xff]
        %v1094 = vld [vmem:[%s355 + $0x1f8] sm:$0xff]
        %v1095 = vld [vmem:[%s355 + $0x200] sm:$0xff]
        %v1096 = vld [vmem:[%s355 + $0x208] sm:$0xff]
        %v1097 = vld [vmem:[%s355 + $0x210] sm:$0xff]
        %v1098 = vld [vmem:[%s355 + $0x218] sm:$0xff]
        %v1099 = vld [vmem:[%s355 + $0x220] sm:$0xff]
        %v1100 = vld [vmem:[%s355 + $0x228] sm:$0xff]
        %v1101 = vld [vmem:[%s355 + $0x230] sm:$0xff]
        %v1102 = vld [vmem:[%s355 + $0x238] sm:$0xff]
        %v1103 = vld [vmem:[%s355 + $0x240] sm:$0xff]
        %v1104 = vld [vmem:[%s355 + $0x248] sm:$0xff]
        %v1105 = vld [vmem:[%s355 + $0x250] sm:$0xff]
        %v1106 = vld [vmem:[%s355 + $0x258] sm:$0xff]
        %v1107 = vld [vmem:[%s355 + $0x260] sm:$0xff]
        %v1108 = vld [vmem:[%s355 + $0x268] sm:$0xff]
        %v1109 = vld [vmem:[%s355 + $0x270] sm:$0xff]
        %v1110 = vld [vmem:[%s355 + $0x278] sm:$0xff]
        %v1111 = vld [vmem:[%s355 + $0x280] sm:$0xff]
        %v1112 = vld [vmem:[%s355 + $0x288] sm:$0xff]
        %v1113 = vld [vmem:[%s355 + $0x290] sm:$0xff]
        %v1114 = vld [vmem:[%s355 + $0x298] sm:$0xff]
        %v1115 = vld [vmem:[%s355 + $0x2a0] sm:$0xff]
        %v1116 = vld [vmem:[%s355 + $0x2a8] sm:$0xff]
        %v1117 = vld [vmem:[%s355 + $0x2b0] sm:$0xff]
        %v1118 = vld [vmem:[%s355 + $0x2b8] sm:$0xff]
        %v1119 = vld [vmem:[%s355 + $0x2c0] sm:$0xff]
        %v1120 = vld [vmem:[%s355 + $0x2c8] sm:$0xff]
        %v1121 = vld [vmem:[%s355 + $0x2d0] sm:$0xff]
        %v1122 = vld [vmem:[%s355 + $0x2d8] sm:$0xff]
        %v1123 = vld [vmem:[%s355 + $0x2e0] sm:$0xff]
        %v1124 = vld [vmem:[%s355 + $0x2e8] sm:$0xff]
        %v1125 = vld [vmem:[%s355 + $0x2f0] sm:$0xff]
        %v1126 = vld [vmem:[%s355 + $0x2f8] sm:$0xff]
        %v1127 = vld [vmem:[%s355 + $0x300] sm:$0xff]
        %v1128 = vld [vmem:[%s355 + $0x308] sm:$0xff]
        %v1129 = vld [vmem:[%s355 + $0x310] sm:$0xff]
        %v1130 = vld [vmem:[%s355 + $0x318] sm:$0xff]
        %v1131 = vld [vmem:[%s355 + $0x320] sm:$0xff]
        %v1132 = vld [vmem:[%s355 + $0x328] sm:$0xff]
        %v1133 = vld [vmem:[%s355 + $0x330] sm:$0xff]
        %v1134 = vld [vmem:[%s355 + $0x338] sm:$0xff]
        %v1135 = vld [vmem:[%s355 + $0x340] sm:$0xff]
        %v1136 = vld [vmem:[%s355 + $0x348] sm:$0xff]
        %v1137 = vld [vmem:[%s355 + $0x350] sm:$0xff]
        %v1138 = vld [vmem:[%s355 + $0x358] sm:$0xff]
        %v1139 = vld [vmem:[%s355 + $0x360] sm:$0xff]
        %v1140 = vld [vmem:[%s355 + $0x368] sm:$0xff]
        %v1141 = vld [vmem:[%s355 + $0x370] sm:$0xff]
        %v1142 = vld [vmem:[%s355 + $0x378] sm:$0xff]
        %v1143 = vld [vmem:[%s355 + $0x380] sm:$0xff]
        %v1144 = vld [vmem:[%s355 + $0x388] sm:$0xff]
        %v1145 = vld [vmem:[%s355 + $0x390] sm:$0xff]
        %v1146 = vld [vmem:[%s355 + $0x398] sm:$0xff]
        %v1147 = vld [vmem:[%s355 + $0x3a0] sm:$0xff]
        %v1148 = vld [vmem:[%s355 + $0x3a8] sm:$0xff]
        %v1149 = vld [vmem:[%s355 + $0x3b0] sm:$0xff]
        %v1150 = vld [vmem:[%s355 + $0x3b8] sm:$0xff]
        %v1151 = vld [vmem:[%s355 + $0x3c0] sm:$0xff]
        %v1152 = vld [vmem:[%s355 + $0x3c8] sm:$0xff]
        %v1153 = vld [vmem:[%s355 + $0x3d0] sm:$0xff]
        %v1154 = vld [vmem:[%s355 + $0x3d8] sm:$0xff]
        %v1155 = vld [vmem:[%s355 + $0x3e0] sm:$0xff]
        %v1156 = vld [vmem:[%s355 + $0x3e8] sm:$0xff]
        %v1157 = vld [vmem:[%s355 + $0x3f0] sm:$0xff]
        %v1158 = vld [vmem:[%s355 + $0x3f8] sm:$0xff]
        %v1159 = vld [vmem:[%s364] sm:$0x3]
        %v1161 = vlaneseq
        %v1162 = vshrl.u32 %v1161, 7
        %v1163 = vsub.s32 0, %v1162
        %v1164 = vrot.slane %v1159, %v1163
        %v1165 = vlaneseq
        %v1166 = vshrl.u32 %v1165, 7
        %v1167 = vsub.s32 1, %v1166
        %v1168 = vrot.slane %v1159, %v1167
        %v1299 = vunpack.c.l.b16 %v1031
        %v1300 = vunpack.c.h.b16 %v1031
        %v1301 = vunpack.c.l.b16 %v1032
        %v1302 = vunpack.c.h.b16 %v1032
        %v1303 = vunpack.c.l.b16 %v1033
        %v1304 = vunpack.c.h.b16 %v1033
        %v1305 = vunpack.c.l.b16 %v1034
        %v1306 = vunpack.c.h.b16 %v1034
        %v1307 = vunpack.c.l.b16 %v1035
        %v1308 = vunpack.c.h.b16 %v1035
        %v1309 = vunpack.c.l.b16 %v1036
        %v1310 = vunpack.c.h.b16 %v1036
        %v1311 = vunpack.c.l.b16 %v1037
        %v1312 = vunpack.c.h.b16 %v1037
        %v1313 = vunpack.c.l.b16 %v1038
        %v1314 = vunpack.c.h.b16 %v1038
        %v1315 = vunpack.c.l.b16 %v1039
        %v1316 = vunpack.c.h.b16 %v1039
        %v1317 = vunpack.c.l.b16 %v1040
        %v1318 = vunpack.c.h.b16 %v1040
        %v1319 = vunpack.c.l.b16 %v1041
        %v1320 = vunpack.c.h.b16 %v1041
        %v1321 = vunpack.c.l.b16 %v1042
        %v1322 = vunpack.c.h.b16 %v1042
        %v1323 = vunpack.c.l.b16 %v1043
        %v1324 = vunpack.c.h.b16 %v1043
        %v1325 = vunpack.c.l.b16 %v1044
        %v1326 = vunpack.c.h.b16 %v1044
        %v1327 = vunpack.c.l.b16 %v1045
        %v1328 = vunpack.c.h.b16 %v1045
        %v1329 = vunpack.c.l.b16 %v1046
        %v1330 = vunpack.c.h.b16 %v1046
        %v1331 = vunpack.c.l.b16 %v1047
        %v1332 = vunpack.c.h.b16 %v1047
        %v1333 = vunpack.c.l.b16 %v1048
        %v1334 = vunpack.c.h.b16 %v1048
        %v1335 = vunpack.c.l.b16 %v1049
        %v1336 = vunpack.c.h.b16 %v1049
        %v1337 = vunpack.c.l.b16 %v1050
        %v1338 = vunpack.c.h.b16 %v1050
        %v1339 = vunpack.c.l.b16 %v1051
        %v1340 = vunpack.c.h.b16 %v1051
        %v1341 = vunpack.c.l.b16 %v1052
        %v1342 = vunpack.c.h.b16 %v1052
        %v1343 = vunpack.c.l.b16 %v1053
        %v1344 = vunpack.c.h.b16 %v1053
        %v1345 = vunpack.c.l.b16 %v1054
        %v1346 = vunpack.c.h.b16 %v1054
        %v1347 = vunpack.c.l.b16 %v1055
        %v1348 = vunpack.c.h.b16 %v1055
        %v1349 = vunpack.c.l.b16 %v1056
        %v1350 = vunpack.c.h.b16 %v1056
        %v1351 = vunpack.c.l.b16 %v1057
        %v1352 = vunpack.c.h.b16 %v1057
        %v1353 = vunpack.c.l.b16 %v1058
        %v1354 = vunpack.c.h.b16 %v1058
        %v1355 = vunpack.c.l.b16 %v1059
        %v1356 = vunpack.c.h.b16 %v1059
        %v1357 = vunpack.c.l.b16 %v1060
        %v1358 = vunpack.c.h.b16 %v1060
        %v1359 = vunpack.c.l.b16 %v1061
        %v1360 = vunpack.c.h.b16 %v1061
        %v1361 = vunpack.c.l.b16 %v1062
        %v1362 = vunpack.c.h.b16 %v1062
        %v1363 = vunpack.c.l.b16 %v1063
        %v1364 = vunpack.c.h.b16 %v1063
        %v1365 = vunpack.c.l.b16 %v1064
        %v1366 = vunpack.c.h.b16 %v1064
        %v1367 = vunpack.c.l.b16 %v1065
        %v1368 = vunpack.c.h.b16 %v1065
        %v1369 = vunpack.c.l.b16 %v1066
        %v1370 = vunpack.c.h.b16 %v1066
        %v1371 = vunpack.c.l.b16 %v1067
        %v1372 = vunpack.c.h.b16 %v1067
        %v1373 = vunpack.c.l.b16 %v1068
        %v1374 = vunpack.c.h.b16 %v1068
        %v1375 = vunpack.c.l.b16 %v1069
        %v1376 = vunpack.c.h.b16 %v1069
        %v1377 = vunpack.c.l.b16 %v1070
        %v1378 = vunpack.c.h.b16 %v1070
        %v1379 = vunpack.c.l.b16 %v1071
        %v1380 = vunpack.c.h.b16 %v1071
        %v1381 = vunpack.c.l.b16 %v1072
        %v1382 = vunpack.c.h.b16 %v1072
        %v1383 = vunpack.c.l.b16 %v1073
        %v1384 = vunpack.c.h.b16 %v1073
        %v1385 = vunpack.c.l.b16 %v1074
        %v1386 = vunpack.c.h.b16 %v1074
        %v1387 = vunpack.c.l.b16 %v1075
        %v1388 = vunpack.c.h.b16 %v1075
        %v1389 = vunpack.c.l.b16 %v1076
        %v1390 = vunpack.c.h.b16 %v1076
        %v1391 = vunpack.c.l.b16 %v1077
        %v1392 = vunpack.c.h.b16 %v1077
        %v1393 = vunpack.c.l.b16 %v1078
        %v1394 = vunpack.c.h.b16 %v1078
        %v1395 = vunpack.c.l.b16 %v1079
        %v1396 = vunpack.c.h.b16 %v1079
        %v1397 = vunpack.c.l.b16 %v1080
        %v1398 = vunpack.c.h.b16 %v1080
        %v1399 = vunpack.c.l.b16 %v1081
        %v1400 = vunpack.c.h.b16 %v1081
        %v1401 = vunpack.c.l.b16 %v1082
        %v1402 = vunpack.c.h.b16 %v1082
        %v1403 = vunpack.c.l.b16 %v1083
        %v1404 = vunpack.c.h.b16 %v1083
        %v1405 = vunpack.c.l.b16 %v1084
        %v1406 = vunpack.c.h.b16 %v1084
        %v1407 = vunpack.c.l.b16 %v1085
        %v1408 = vunpack.c.h.b16 %v1085
        %v1409 = vunpack.c.l.b16 %v1086
        %v1410 = vunpack.c.h.b16 %v1086
        %v1411 = vunpack.c.l.b16 %v1087
        %v1412 = vunpack.c.h.b16 %v1087
        %v1413 = vunpack.c.l.b16 %v1088
        %v1414 = vunpack.c.h.b16 %v1088
        %v1415 = vunpack.c.l.b16 %v1089
        %v1416 = vunpack.c.h.b16 %v1089
        %v1417 = vunpack.c.l.b16 %v1090
        %v1418 = vunpack.c.h.b16 %v1090
        %v1419 = vunpack.c.l.b16 %v1091
        %v1420 = vunpack.c.h.b16 %v1091
        %v1421 = vunpack.c.l.b16 %v1092
        %v1422 = vunpack.c.h.b16 %v1092
        %v1423 = vunpack.c.l.b16 %v1093
        %v1424 = vunpack.c.h.b16 %v1093
        %v1425 = vunpack.c.l.b16 %v1094
        %v1426 = vunpack.c.h.b16 %v1094
        %v1427 = vunpack.c.l.b16 %v1095
        %v1428 = vunpack.c.h.b16 %v1095
        %v1429 = vunpack.c.l.b16 %v1096
        %v1430 = vunpack.c.h.b16 %v1096
        %v1431 = vunpack.c.l.b16 %v1097
        %v1432 = vunpack.c.h.b16 %v1097
        %v1433 = vunpack.c.l.b16 %v1098
        %v1434 = vunpack.c.h.b16 %v1098
        %v1435 = vunpack.c.l.b16 %v1099
        %v1436 = vunpack.c.h.b16 %v1099
        %v1437 = vunpack.c.l.b16 %v1100
        %v1438 = vunpack.c.h.b16 %v1100
        %v1439 = vunpack.c.l.b16 %v1101
        %v1440 = vunpack.c.h.b16 %v1101
        %v1441 = vunpack.c.l.b16 %v1102
        %v1442 = vunpack.c.h.b16 %v1102
        %v1443 = vunpack.c.l.b16 %v1103
        %v1444 = vunpack.c.h.b16 %v1103
        %v1445 = vunpack.c.l.b16 %v1104
        %v1446 = vunpack.c.h.b16 %v1104
        %v1447 = vunpack.c.l.b16 %v1105
        %v1448 = vunpack.c.h.b16 %v1105
        %v1449 = vunpack.c.l.b16 %v1106
        %v1450 = vunpack.c.h.b16 %v1106
        %v1451 = vunpack.c.l.b16 %v1107
        %v1452 = vunpack.c.h.b16 %v1107
        %v1453 = vunpack.c.l.b16 %v1108
        %v1454 = vunpack.c.h.b16 %v1108
        %v1455 = vunpack.c.l.b16 %v1109
        %v1456 = vunpack.c.h.b16 %v1109
        %v1457 = vunpack.c.l.b16 %v1110
        %v1458 = vunpack.c.h.b16 %v1110
        %v1459 = vunpack.c.l.b16 %v1111
        %v1460 = vunpack.c.h.b16 %v1111
        %v1461 = vunpack.c.l.b16 %v1112
        %v1462 = vunpack.c.h.b16 %v1112
        %v1463 = vunpack.c.l.b16 %v1113
        %v1464 = vunpack.c.h.b16 %v1113
        %v1465 = vunpack.c.l.b16 %v1114
        %v1466 = vunpack.c.h.b16 %v1114
        %v1467 = vunpack.c.l.b16 %v1115
        %v1468 = vunpack.c.h.b16 %v1115
        %v1469 = vunpack.c.l.b16 %v1116
        %v1470 = vunpack.c.h.b16 %v1116
        %v1471 = vunpack.c.l.b16 %v1117
        %v1472 = vunpack.c.h.b16 %v1117
        %v1473 = vunpack.c.l.b16 %v1118
        %v1474 = vunpack.c.h.b16 %v1118
        %v1475 = vunpack.c.l.b16 %v1119
        %v1476 = vunpack.c.h.b16 %v1119
        %v1477 = vunpack.c.l.b16 %v1120
        %v1478 = vunpack.c.h.b16 %v1120
        %v1479 = vunpack.c.l.b16 %v1121
        %v1480 = vunpack.c.h.b16 %v1121
        %v1481 = vunpack.c.l.b16 %v1122
        %v1482 = vunpack.c.h.b16 %v1122
        %v1483 = vunpack.c.l.b16 %v1123
        %v1484 = vunpack.c.h.b16 %v1123
        %v1485 = vunpack.c.l.b16 %v1124
        %v1486 = vunpack.c.h.b16 %v1124
        %v1487 = vunpack.c.l.b16 %v1125
        %v1488 = vunpack.c.h.b16 %v1125
        %v1489 = vunpack.c.l.b16 %v1126
        %v1490 = vunpack.c.h.b16 %v1126
        %v1491 = vunpack.c.l.b16 %v1127
        %v1492 = vunpack.c.h.b16 %v1127
        %v1493 = vunpack.c.l.b16 %v1128
        %v1494 = vunpack.c.h.b16 %v1128
        %v1495 = vunpack.c.l.b16 %v1129
        %v1496 = vunpack.c.h.b16 %v1129
        %v1497 = vunpack.c.l.b16 %v1130
        %v1498 = vunpack.c.h.b16 %v1130
        %v1499 = vunpack.c.l.b16 %v1131
        %v1500 = vunpack.c.h.b16 %v1131
        %v1501 = vunpack.c.l.b16 %v1132
        %v1502 = vunpack.c.h.b16 %v1132
        %v1503 = vunpack.c.l.b16 %v1133
        %v1504 = vunpack.c.h.b16 %v1133
        %v1505 = vunpack.c.l.b16 %v1134
        %v1506 = vunpack.c.h.b16 %v1134
        %v1507 = vunpack.c.l.b16 %v1135
        %v1508 = vunpack.c.h.b16 %v1135
        %v1509 = vunpack.c.l.b16 %v1136
        %v1510 = vunpack.c.h.b16 %v1136
        %v1511 = vunpack.c.l.b16 %v1137
        %v1512 = vunpack.c.h.b16 %v1137
        %v1513 = vunpack.c.l.b16 %v1138
        %v1514 = vunpack.c.h.b16 %v1138
        %v1515 = vunpack.c.l.b16 %v1139
        %v1516 = vunpack.c.h.b16 %v1139
        %v1517 = vunpack.c.l.b16 %v1140
        %v1518 = vunpack.c.h.b16 %v1140
        %v1519 = vunpack.c.l.b16 %v1141
        %v1520 = vunpack.c.h.b16 %v1141
        %v1521 = vunpack.c.l.b16 %v1142
        %v1522 = vunpack.c.h.b16 %v1142
        %v1523 = vunpack.c.l.b16 %v1143
        %v1524 = vunpack.c.h.b16 %v1143
        %v1525 = vunpack.c.l.b16 %v1144
        %v1526 = vunpack.c.h.b16 %v1144
        %v1527 = vunpack.c.l.b16 %v1145
        %v1528 = vunpack.c.h.b16 %v1145
        %v1529 = vunpack.c.l.b16 %v1146
        %v1530 = vunpack.c.h.b16 %v1146
        %v1531 = vunpack.c.l.b16 %v1147
        %v1532 = vunpack.c.h.b16 %v1147
        %v1533 = vunpack.c.l.b16 %v1148
        %v1534 = vunpack.c.h.b16 %v1148
        %v1535 = vunpack.c.l.b16 %v1149
        %v1536 = vunpack.c.h.b16 %v1149
        %v1537 = vunpack.c.l.b16 %v1150
        %v1538 = vunpack.c.h.b16 %v1150
        %v1539 = vunpack.c.l.b16 %v1151
        %v1540 = vunpack.c.h.b16 %v1151
        %v1541 = vunpack.c.l.b16 %v1152
        %v1542 = vunpack.c.h.b16 %v1152
        %v1543 = vunpack.c.l.b16 %v1153
        %v1544 = vunpack.c.h.b16 %v1153
        %v1545 = vunpack.c.l.b16 %v1154
        %v1546 = vunpack.c.h.b16 %v1154
        %v1547 = vunpack.c.l.b16 %v1155
        %v1548 = vunpack.c.h.b16 %v1155
        %v1549 = vunpack.c.l.b16 %v1156
        %v1550 = vunpack.c.h.b16 %v1156
        %v1551 = vunpack.c.l.b16 %v1157
        %v1552 = vunpack.c.h.b16 %v1157
        %v1553 = vunpack.c.l.b16 %v1158
        %v1554 = vunpack.c.h.b16 %v1158
        %v1555 = vpack.c.b16 %v1301, %v1299
        %v1556 = vpack.c.b16 %v1302, %v1300
        %v1557 = vpack.c.b16 %v1305, %v1303
        %v1558 = vpack.c.b16 %v1306, %v1304
        %v1559 = vpack.c.b16 %v1309, %v1307
        %v1560 = vpack.c.b16 %v1310, %v1308
        %v1561 = vpack.c.b16 %v1313, %v1311
        %v1562 = vpack.c.b16 %v1314, %v1312
        %v1563 = vpack.c.b16 %v1317, %v1315
        %v1564 = vpack.c.b16 %v1318, %v1316
        %v1565 = vpack.c.b16 %v1321, %v1319
        %v1566 = vpack.c.b16 %v1322, %v1320
        %v1567 = vpack.c.b16 %v1325, %v1323
        %v1568 = vpack.c.b16 %v1326, %v1324
        %v1569 = vpack.c.b16 %v1329, %v1327
        %v1570 = vpack.c.b16 %v1330, %v1328
        %v1571 = vpack.c.b16 %v1333, %v1331
        %v1572 = vpack.c.b16 %v1334, %v1332
        %v1573 = vpack.c.b16 %v1337, %v1335
        %v1574 = vpack.c.b16 %v1338, %v1336
        %v1575 = vpack.c.b16 %v1341, %v1339
        %v1576 = vpack.c.b16 %v1342, %v1340
        %v1577 = vpack.c.b16 %v1345, %v1343
        %v1578 = vpack.c.b16 %v1346, %v1344
        %v1579 = vpack.c.b16 %v1349, %v1347
        %v1580 = vpack.c.b16 %v1350, %v1348
        %v1581 = vpack.c.b16 %v1353, %v1351
        %v1582 = vpack.c.b16 %v1354, %v1352
        %v1583 = vpack.c.b16 %v1357, %v1355
        %v1584 = vpack.c.b16 %v1358, %v1356
        %v1585 = vpack.c.b16 %v1361, %v1359
        %v1586 = vpack.c.b16 %v1362, %v1360
        %v1587 = vpack.c.b16 %v1365, %v1363
        %v1588 = vpack.c.b16 %v1366, %v1364
        %v1589 = vpack.c.b16 %v1369, %v1367
        %v1590 = vpack.c.b16 %v1370, %v1368
        %v1591 = vpack.c.b16 %v1373, %v1371
        %v1592 = vpack.c.b16 %v1374, %v1372
        %v1593 = vpack.c.b16 %v1377, %v1375
        %v1594 = vpack.c.b16 %v1378, %v1376
        %v1595 = vpack.c.b16 %v1381, %v1379
        %v1596 = vpack.c.b16 %v1382, %v1380
        %v1597 = vpack.c.b16 %v1385, %v1383
        %v1598 = vpack.c.b16 %v1386, %v1384
        %v1599 = vpack.c.b16 %v1389, %v1387
        %v1600 = vpack.c.b16 %v1390, %v1388
        %v1601 = vpack.c.b16 %v1393, %v1391
        %v1602 = vpack.c.b16 %v1394, %v1392
        %v1603 = vpack.c.b16 %v1397, %v1395
        %v1604 = vpack.c.b16 %v1398, %v1396
        %v1605 = vpack.c.b16 %v1401, %v1399
        %v1606 = vpack.c.b16 %v1402, %v1400
        %v1607 = vpack.c.b16 %v1405, %v1403
        %v1608 = vpack.c.b16 %v1406, %v1404
        %v1609 = vpack.c.b16 %v1409, %v1407
        %v1610 = vpack.c.b16 %v1410, %v1408
        %v1611 = vpack.c.b16 %v1413, %v1411
        %v1612 = vpack.c.b16 %v1414, %v1412
        %v1613 = vpack.c.b16 %v1417, %v1415
        %v1614 = vpack.c.b16 %v1418, %v1416
        %v1615 = vpack.c.b16 %v1421, %v1419
        %v1616 = vpack.c.b16 %v1422, %v1420
        %v1617 = vpack.c.b16 %v1425, %v1423
        %v1618 = vpack.c.b16 %v1426, %v1424
        %v1619 = vpack.c.b16 %v1429, %v1427
        %v1620 = vpack.c.b16 %v1430, %v1428
        %v1621 = vpack.c.b16 %v1433, %v1431
        %v1622 = vpack.c.b16 %v1434, %v1432
        %v1623 = vpack.c.b16 %v1437, %v1435
        %v1624 = vpack.c.b16 %v1438, %v1436
        %v1625 = vpack.c.b16 %v1441, %v1439
        %v1626 = vpack.c.b16 %v1442, %v1440
        %v1627 = vpack.c.b16 %v1445, %v1443
        %v1628 = vpack.c.b16 %v1446, %v1444
        %v1629 = vpack.c.b16 %v1449, %v1447
        %v1630 = vpack.c.b16 %v1450, %v1448
        %v1631 = vpack.c.b16 %v1453, %v1451
        %v1632 = vpack.c.b16 %v1454, %v1452
        %v1633 = vpack.c.b16 %v1457, %v1455
        %v1634 = vpack.c.b16 %v1458, %v1456
        %v1635 = vpack.c.b16 %v1461, %v1459
        %v1636 = vpack.c.b16 %v1462, %v1460
        %v1637 = vpack.c.b16 %v1465, %v1463
        %v1638 = vpack.c.b16 %v1466, %v1464
        %v1639 = vpack.c.b16 %v1469, %v1467
        %v1640 = vpack.c.b16 %v1470, %v1468
        %v1641 = vpack.c.b16 %v1473, %v1471
        %v1642 = vpack.c.b16 %v1474, %v1472
        %v1643 = vpack.c.b16 %v1477, %v1475
        %v1644 = vpack.c.b16 %v1478, %v1476
        %v1645 = vpack.c.b16 %v1481, %v1479
        %v1646 = vpack.c.b16 %v1482, %v1480
        %v1647 = vpack.c.b16 %v1485, %v1483
        %v1648 = vpack.c.b16 %v1486, %v1484
        %v1649 = vpack.c.b16 %v1489, %v1487
        %v1650 = vpack.c.b16 %v1490, %v1488
        %v1651 = vpack.c.b16 %v1493, %v1491
        %v1652 = vpack.c.b16 %v1494, %v1492
        %v1653 = vpack.c.b16 %v1497, %v1495
        %v1654 = vpack.c.b16 %v1498, %v1496
        %v1655 = vpack.c.b16 %v1501, %v1499
        %v1656 = vpack.c.b16 %v1502, %v1500
        %v1657 = vpack.c.b16 %v1505, %v1503
        %v1658 = vpack.c.b16 %v1506, %v1504
        %v1659 = vpack.c.b16 %v1509, %v1507
        %v1660 = vpack.c.b16 %v1510, %v1508
        %v1661 = vpack.c.b16 %v1513, %v1511
        %v1662 = vpack.c.b16 %v1514, %v1512
        %v1663 = vpack.c.b16 %v1517, %v1515
        %v1664 = vpack.c.b16 %v1518, %v1516
        %v1665 = vpack.c.b16 %v1521, %v1519
        %v1666 = vpack.c.b16 %v1522, %v1520
        %v1667 = vpack.c.b16 %v1525, %v1523
        %v1668 = vpack.c.b16 %v1526, %v1524
        %v1669 = vpack.c.b16 %v1529, %v1527
        %v1670 = vpack.c.b16 %v1530, %v1528
        %v1671 = vpack.c.b16 %v1533, %v1531
        %v1672 = vpack.c.b16 %v1534, %v1532
        %v1673 = vpack.c.b16 %v1537, %v1535
        %v1674 = vpack.c.b16 %v1538, %v1536
        %v1675 = vpack.c.b16 %v1541, %v1539
        %v1676 = vpack.c.b16 %v1542, %v1540
        %v1677 = vpack.c.b16 %v1545, %v1543
        %v1678 = vpack.c.b16 %v1546, %v1544
        %v1679 = vpack.c.b16 %v1549, %v1547
        %v1680 = vpack.c.b16 %v1550, %v1548
        %v1681 = vpack.c.b16 %v1553, %v1551
        %v1682 = vpack.c.b16 %v1554, %v1552
        %1811 = vmatprep.subr.bf16.mxu0 %v1556
        %1812 = vmatpush1.bf16.msra.mxu0 %v1555
        %1813 = vmatprep.subr.bf16.mxu0 %v1558
        %1814 = vmatpush1.bf16.msra.mxu0 %v1557
        %1815 = vmatprep.subr.bf16.mxu0 %v1560
        %1816 = vmatpush1.bf16.msra.mxu0 %v1559
        %1817 = vmatprep.subr.bf16.mxu0 %v1562
        %1818 = vmatpush1.bf16.msra.mxu0 %v1561
        %1819 = vmatprep.subr.bf16.mxu0 %v1564
        %1820 = vmatpush1.bf16.msra.mxu0 %v1563
        %1821 = vmatprep.subr.bf16.mxu0 %v1566
        %1822 = vmatpush1.bf16.msra.mxu0 %v1565
        %1823 = vmatprep.subr.bf16.mxu0 %v1568
        %1824 = vmatpush1.bf16.msra.mxu0 %v1567
        %1825 = vmatprep.subr.bf16.mxu0 %v1570
        %1826 = vmatpush1.bf16.msra.mxu0 %v1569
        %1827 = vmatprep.subr.bf16.mxu0 %v1572
        %1828 = vmatpush1.bf16.msra.mxu0 %v1571
        %1829 = vmatprep.subr.bf16.mxu0 %v1574
        %1830 = vmatpush1.bf16.msra.mxu0 %v1573
        %1831 = vmatprep.subr.bf16.mxu0 %v1576
        %1832 = vmatpush1.bf16.msra.mxu0 %v1575
        %1833 = vmatprep.subr.bf16.mxu0 %v1578
        %1834 = vmatpush1.bf16.msra.mxu0 %v1577
        %1835 = vmatprep.subr.bf16.mxu0 %v1580
        %1836 = vmatpush1.bf16.msra.mxu0 %v1579
        %1837 = vmatprep.subr.bf16.mxu0 %v1582
        %1838 = vmatpush1.bf16.msra.mxu0 %v1581
        %1839 = vmatprep.subr.bf16.mxu0 %v1584
        %1840 = vmatpush1.bf16.msra.mxu0 %v1583
        %1841 = vmatprep.subr.bf16.mxu0 %v1586
        %1842 = vmatpush1.bf16.msra.mxu0 %v1585
        %1843 = vmatprep.mubr.bf16.mxu0 %v1000
        %1844 = vmatmul.mubr.bf16.gmra.mrb[0].mxu0 %v999
        %v1845 = vpop.f32.mrb[0].mxu0
        %v1846 = vadd.f32 %v1164, %v1845
        %v1847 = vpop.f32.mrb[0].mxu0
        %v1848 = vadd.f32 %v1168, %v1847
        %v1849 = vpop.f32.mrb[0].mxu0
        %v1850 = vadd.f32 %v1164, %v1849
        %v1851 = vpop.f32.mrb[0].mxu0
        %v1852 = vadd.f32 %v1168, %v1851
        %1853 = vmatprep.mubr.bf16.mxu0 %v1008
        %1854 = vmatmul.mubr.bf16.gmra.mrb[0].mxu0 %v1007
        %v1855 = vpop.f32.mrb[0].mxu0
        %v1856 = vadd.f32 %v1164, %v1855
        %v1857 = vpop.f32.mrb[0].mxu0
        %v1858 = vadd.f32 %v1168, %v1857
        %v1859 = vpop.f32.mrb[0].mxu0
        %v1860 = vadd.f32 %v1164, %v1859
        %v1861 = vpop.f32.mrb[0].mxu0
        %v1862 = vadd.f32 %v1168, %v1861
        %1863 = vmatprep.mubr.bf16.mxu0 %v1016
        %1864 = vmatmul.mubr.bf16.gmra.mrb[0].mxu0 %v1015
        %v1865 = vpop.f32.mrb[0].mxu0
        %v1866 = vadd.f32 %v1164, %v1865
        %v1867 = vpop.f32.mrb[0].mxu0
        %v1868 = vadd.f32 %v1168, %v1867
        %v1869 = vpop.f32.mrb[0].mxu0
        %v1870 = vadd.f32 %v1164, %v1869
        %v1871 = vpop.f32.mrb[0].mxu0
        %v1872 = vadd.f32 %v1168, %v1871
        %1873 = vmatprep.mubr.bf16.mxu0 %v1024
        %1874 = vmatmul.mubr.bf16.gmra.mrb[0].mxu0 %v1023
        %v1875 = vpop.f32.mrb[0].mxu0
        %v1876 = vadd.f32 %v1164, %v1875
        %v1877 = vpop.f32.mrb[0].mxu0
        %v1878 = vadd.f32 %v1168, %v1877
        %v1879 = vpop.f32.mrb[0].mxu0
        %v1880 = vadd.f32 %v1164, %v1879
        %v1881 = vpop.f32.mrb[0].mxu0
        %v1882 = vadd.f32 %v1168, %v1881
        %1883 = vdwg.mxu0
        %1884 = vmatprep.subr.bf16.mxu0 %v1588
        %1885 = vmatpush1.bf16.msra.mxu0 %v1587
        %1886 = vmatprep.subr.bf16.mxu0 %v1590
        %1887 = vmatpush1.bf16.msra.mxu0 %v1589
        %1888 = vmatprep.subr.bf16.mxu0 %v1592
        %1889 = vmatpush1.bf16.msra.mxu0 %v1591
        %1890 = vmatprep.subr.bf16.mxu0 %v1594
        %1891 = vmatpush1.bf16.msra.mxu0 %v1593
        %1892 = vmatprep.subr.bf16.mxu0 %v1596
        %1893 = vmatpush1.bf16.msra.mxu0 %v1595
        %1894 = vmatprep.subr.bf16.mxu0 %v1598
        %1895 = vmatpush1.bf16.msra.mxu0 %v1597
        %1896 = vmatprep.subr.bf16.mxu0 %v1600
        %1897 = vmatpush1.bf16.msra.mxu0 %v1599
        %1898 = vmatprep.subr.bf16.mxu0 %v1602
        %1899 = vmatpush1.bf16.msra.mxu0 %v1601
        %1900 = vmatprep.subr.bf16.mxu0 %v1604
        %1901 = vmatpush1.bf16.msra.mxu0 %v1603
        %1902 = vmatprep.subr.bf16.mxu0 %v1606
        %1903 = vmatpush1.bf16.msra.mxu0 %v1605
        %1904 = vmatprep.subr.bf16.mxu0 %v1608
        %1905 = vmatpush1.bf16.msra.mxu0 %v1607
        %1906 = vmatprep.subr.bf16.mxu0 %v1610
        %1907 = vmatpush1.bf16.msra.mxu0 %v1609
        %1908 = vmatprep.subr.bf16.mxu0 %v1612
        %1909 = vmatpush1.bf16.msra.mxu0 %v1611
        %1910 = vmatprep.subr.bf16.mxu0 %v1614
        %1911 = vmatpush1.bf16.msra.mxu0 %v1613
        %1912 = vmatprep.subr.bf16.mxu0 %v1616
        %1913 = vmatpush1.bf16.msra.mxu0 %v1615
        %1914 = vmatprep.subr.bf16.mxu0 %v1618
        %1915 = vmatpush1.bf16.msra.mxu0 %v1617
        %1916 = vmatprep.mubr.bf16.mxu0 %v1002
        %1917 = vmatmul.mubr.bf16.gmra.mrb[0].mxu0 %v1001
        %v1918 = vpop.f32.mrb[0].mxu0
        %v1919 = vadd.f32 %v1846, %v1918
        %v1920 = vpop.f32.mrb[0].mxu0
        %v1921 = vadd.f32 %v1848, %v1920
        %v1922 = vpop.f32.mrb[0].mxu0
        %v1923 = vadd.f32 %v1850, %v1922
        %v1924 = vpop.f32.mrb[0].mxu0
        %v1925 = vadd.f32 %v1852, %v1924
        %1926 = vmatprep.mubr.bf16.mxu0 %v1010
        %1927 = vmatmul.mubr.bf16.gmra.mrb[0].mxu0 %v1009
        %v1928 = vpop.f32.mrb[0].mxu0
        %v1929 = vadd.f32 %v1856, %v1928
        %v1930 = vpop.f32.mrb[0].mxu0
        %v1931 = vadd.f32 %v1858, %v1930
        %v1932 = vpop.f32.mrb[0].mxu0
        %v1933 = vadd.f32 %v1860, %v1932
        %v1934 = vpop.f32.mrb[0].mxu0
        %v1935 = vadd.f32 %v1862, %v1934
        %1936 = vmatprep.mubr.bf16.mxu0 %v1018
        %1937 = vmatmul.mubr.bf16.gmra.mrb[0].mxu0 %v1017
        %v1938 = vpop.f32.mrb[0].mxu0
        %v1939 = vadd.f32 %v1866, %v1938
        %v1940 = vpop.f32.mrb[0].mxu0
        %v1941 = vadd.f32 %v1868, %v1940
        %v1942 = vpop.f32.mrb[0].mxu0
        %v1943 = vadd.f32 %v1870, %v1942
        %v1944 = vpop.f32.mrb[0].mxu0
        %v1945 = vadd.f32 %v1872, %v1944
        %1946 = vmatprep.mubr.bf16.mxu0 %v1026
        %1947 = vmatmul.mubr.bf16.gmra.mrb[0].mxu0 %v1025
        %v1948 = vpop.f32.mrb[0].mxu0
        %v1949 = vadd.f32 %v1876, %v1948
        %v1950 = vpop.f32.mrb[0].mxu0
        %v1951 = vadd.f32 %v1878, %v1950
        %v1952 = vpop.f32.mrb[0].mxu0
        %v1953 = vadd.f32 %v1880, %v1952
        %v1954 = vpop.f32.mrb[0].mxu0
        %v1955 = vadd.f32 %v1882, %v1954
        %1956 = vdwg.mxu0
        %1957 = vmatprep.subr.bf16.mxu0 %v1620
        %1958 = vmatpush1.bf16.msra.mxu0 %v1619
        %1959 = vmatprep.subr.bf16.mxu0 %v1622
        %1960 = vmatpush1.bf16.msra.mxu0 %v1621
        %1961 = vmatprep.subr.bf16.mxu0 %v1624
        %1962 = vmatpush1.bf16.msra.mxu0 %v1623
        %1963 = vmatprep.subr.bf16.mxu0 %v1626
        %1964 = vmatpush1.bf16.msra.mxu0 %v1625
        %1965 = vmatprep.subr.bf16.mxu0 %v1628
        %1966 = vmatpush1.bf16.msra.mxu0 %v1627
        %1967 = vmatprep.subr.bf16.mxu0 %v1630
        %1968 = vmatpush1.bf16.msra.mxu0 %v1629
        %1969 = vmatprep.subr.bf16.mxu0 %v1632
        %1970 = vmatpush1.bf16.msra.mxu0 %v1631
        %1971 = vmatprep.subr.bf16.mxu0 %v1634
        %1972 = vmatpush1.bf16.msra.mxu0 %v1633
        %1973 = vmatprep.subr.bf16.mxu0 %v1636
        %1974 = vmatpush1.bf16.msra.mxu0 %v1635
        %1975 = vmatprep.subr.bf16.mxu0 %v1638
        %1976 = vmatpush1.bf16.msra.mxu0 %v1637
        %1977 = vmatprep.subr.bf16.mxu0 %v1640
        %1978 = vmatpush1.bf16.msra.mxu0 %v1639
        %1979 = vmatprep.subr.bf16.mxu0 %v1642
        %1980 = vmatpush1.bf16.msra.mxu0 %v1641
        %1981 = vmatprep.subr.bf16.mxu0 %v1644
        %1982 = vmatpush1.bf16.msra.mxu0 %v1643
        %1983 = vmatprep.subr.bf16.mxu0 %v1646
        %1984 = vmatpush1.bf16.msra.mxu0 %v1645
        %1985 = vmatprep.subr.bf16.mxu0 %v1648
        %1986 = vmatpush1.bf16.msra.mxu0 %v1647
        %1987 = vmatprep.subr.bf16.mxu0 %v1650
        %1988 = vmatpush1.bf16.msra.mxu0 %v1649
        %1989 = vmatprep.mubr.bf16.mxu0 %v1004
        %1990 = vmatmul.mubr.bf16.gmra.mrb[0].mxu0 %v1003
        %v1991 = vpop.f32.mrb[0].mxu0
        %v1992 = vadd.f32 %v1919, %v1991
        %v1993 = vpop.f32.mrb[0].mxu0
        %v1994 = vadd.f32 %v1921, %v1993
        %v1995 = vpop.f32.mrb[0].mxu0
        %v1996 = vadd.f32 %v1923, %v1995
        %v1997 = vpop.f32.mrb[0].mxu0
        %v1998 = vadd.f32 %v1925, %v1997
        %1999 = vmatprep.mubr.bf16.mxu0 %v1012
        %2000 = vmatmul.mubr.bf16.gmra.mrb[0].mxu0 %v1011
        %v2001 = vpop.f32.mrb[0].mxu0
        %v2002 = vadd.f32 %v1929, %v2001
        %v2003 = vpop.f32.mrb[0].mxu0
        %v2004 = vadd.f32 %v1931, %v2003
        %v2005 = vpop.f32.mrb[0].mxu0
        %v2006 = vadd.f32 %v1933, %v2005
        %v2007 = vpop.f32.mrb[0].mxu0
        %v2008 = vadd.f32 %v1935, %v2007
        %2009 = vmatprep.mubr.bf16.mxu0 %v1020
        %2010 = vmatmul.mubr.bf16.gmra.mrb[0].mxu0 %v1019
        %v2011 = vpop.f32.mrb[0].mxu0
        %v2012 = vadd.f32 %v1939, %v2011
        %v2013 = vpop.f32.mrb[0].mxu0
        %v2014 = vadd.f32 %v1941, %v2013
        %v2015 = vpop.f32.mrb[0].mxu0
        %v2016 = vadd.f32 %v1943, %v2015
        %v2017 = vpop.f32.mrb[0].mxu0
        %v2018 = vadd.f32 %v1945, %v2017
        %2019 = vmatprep.mubr.bf16.mxu0 %v1028
        %2020 = vmatmul.mubr.bf16.gmra.mrb[0].mxu0 %v1027
        %v2021 = vpop.f32.mrb[0].mxu0
        %v2022 = vadd.f32 %v1949, %v2021
        %v2023 = vpop.f32.mrb[0].mxu0
        %v2024 = vadd.f32 %v1951, %v2023
        %v2025 = vpop.f32.mrb[0].mxu0
        %v2026 = vadd.f32 %v1953, %v2025
        %v2027 = vpop.f32.mrb[0].mxu0
        %v2028 = vadd.f32 %v1955, %v2027
        %2029 = vdwg.mxu0
        %2030 = vmatprep.subr.bf16.mxu0 %v1652
        %2031 = vmatpush1.bf16.msra.mxu0 %v1651
        %2032 = vmatprep.subr.bf16.mxu0 %v1654
        %2033 = vmatpush1.bf16.msra.mxu0 %v1653
        %2034 = vmatprep.subr.bf16.mxu0 %v1656
        %2035 = vmatpush1.bf16.msra.mxu0 %v1655
        %2036 = vmatprep.subr.bf16.mxu0 %v1658
        %2037 = vmatpush1.bf16.msra.mxu0 %v1657
        %2038 = vmatprep.subr.bf16.mxu0 %v1660
        %2039 = vmatpush1.bf16.msra.mxu0 %v1659
        %2040 = vmatprep.subr.bf16.mxu0 %v1662
        %2041 = vmatpush1.bf16.msra.mxu0 %v1661
        %2042 = vmatprep.subr.bf16.mxu0 %v1664
        %2043 = vmatpush1.bf16.msra.mxu0 %v1663
        %2044 = vmatprep.subr.bf16.mxu0 %v1666
        %2045 = vmatpush1.bf16.msra.mxu0 %v1665
        %2046 = vmatprep.subr.bf16.mxu0 %v1668
        %2047 = vmatpush1.bf16.msra.mxu0 %v1667
        %2048 = vmatprep.subr.bf16.mxu0 %v1670
        %2049 = vmatpush1.bf16.msra.mxu0 %v1669
        %2050 = vmatprep.subr.bf16.mxu0 %v1672
        %2051 = vmatpush1.bf16.msra.mxu0 %v1671
        %2052 = vmatprep.subr.bf16.mxu0 %v1674
        %2053 = vmatpush1.bf16.msra.mxu0 %v1673
        %2054 = vmatprep.subr.bf16.mxu0 %v1676
        %2055 = vmatpush1.bf16.msra.mxu0 %v1675
        %2056 = vmatprep.subr.bf16.mxu0 %v1678
        %2057 = vmatpush1.bf16.msra.mxu0 %v1677
        %2058 = vmatprep.subr.bf16.mxu0 %v1680
        %2059 = vmatpush1.bf16.msra.mxu0 %v1679
        %2060 = vmatprep.subr.bf16.mxu0 %v1682
        %2061 = vmatpush1.bf16.msra.mxu0 %v1681
        %2062 = vmatprep.mubr.bf16.mxu0 %v1006
        %2063 = vmatmul.mubr.bf16.gmra.mrb[0].mxu0 %v1005
        %v2064 = vpop.f32.mrb[0].mxu0
        %v2065 = vadd.f32 %v1992, %v2064
        %v2066 = vpop.f32.mrb[0].mxu0
        %v2067 = vadd.f32 %v1994, %v2066
        %v2068 = vpop.f32.mrb[0].mxu0
        %v2069 = vadd.f32 %v1996, %v2068
        %v2070 = vpop.f32.mrb[0].mxu0
        %v2071 = vadd.f32 %v1998, %v2070
        %2072 = vmatprep.mubr.bf16.mxu0 %v1014
        %2073 = vmatmul.mubr.bf16.gmra.mrb[0].mxu0 %v1013
        %v2074 = vpop.f32.mrb[0].mxu0
        %v2075 = vadd.f32 %v2002, %v2074
        %v2076 = vpop.f32.mrb[0].mxu0
        %v2077 = vadd.f32 %v2004, %v2076
        %v2078 = vpop.f32.mrb[0].mxu0
        %v2079 = vadd.f32 %v2006, %v2078
        %v2080 = vpop.f32.mrb[0].mxu0
        %v2081 = vadd.f32 %v2008, %v2080
        %2082 = vmatprep.mubr.bf16.mxu0 %v1022
        %2083 = vmatmul.mubr.bf16.gmra.mrb[0].mxu0 %v1021
        %v2084 = vpop.f32.mrb[0].mxu0
        %v2085 = vadd.f32 %v2012, %v2084
        %v2086 = vpop.f32.mrb[0].mxu0
        %v2087 = vadd.f32 %v2014, %v2086
        %v2088 = vpop.f32.mrb[0].mxu0
        %v2089 = vadd.f32 %v2016, %v2088
        %v2090 = vpop.f32.mrb[0].mxu0
        %v2091 = vadd.f32 %v2018, %v2090
        %2092 = vmatprep.mubr.bf16.mxu0 %v1030
        %2093 = vmatmul.mubr.bf16.gmra.mrb[0].mxu0 %v1029
        %v2094 = vpop.f32.mrb[0].mxu0
        %v2095 = vadd.f32 %v2022, %v2094
        %v2096 = vpop.f32.mrb[0].mxu0
        %v2097 = vadd.f32 %v2024, %v2096
        %v2098 = vpop.f32.mrb[0].mxu0
        %v2099 = vadd.f32 %v2026, %v2098
        %v2100 = vpop.f32.mrb[0].mxu0
        %v2101 = vadd.f32 %v2028, %v2100
        %2102 = vdwg.mxu0
        %v2103 = vmax.f32 %v2065, 0.0
        %v2104 = vmax.f32 %v2067, 0.0
        %v2105 = vmax.f32 %v2069, 0.0
        %v2106 = vmax.f32 %v2071, 0.0
        %v2107 = vmax.f32 %v2075, 0.0
        %v2108 = vmax.f32 %v2077, 0.0
        %v2109 = vmax.f32 %v2079, 0.0
        %v2110 = vmax.f32 %v2081, 0.0
        %v2111 = vmax.f32 %v2085, 0.0
        %v2112 = vmax.f32 %v2087, 0.0
        %v2113 = vmax.f32 %v2089, 0.0
        %v2114 = vmax.f32 %v2091, 0.0
        %v2115 = vmax.f32 %v2095, 0.0
        %v2116 = vmax.f32 %v2097, 0.0
        %v2117 = vmax.f32 %v2099, 0.0
        %v2118 = vmax.f32 %v2101, 0.0
        %v2119 = vld [vmem:[#allocation3] sm:$0xff]
        %v2120 = vld [vmem:[#allocation3 + $0x8] sm:$0xff]
        %v2121 = vld [vmem:[#allocation3 + $0x10] sm:$0xff]
        %v2122 = vld [vmem:[#allocation3 + $0x18] sm:$0xff]
        %v2123 = vld [vmem:[#allocation3 + $0x20] sm:$0xff]
        %v2124 = vld [vmem:[#allocation3 + $0x28] sm:$0xff]
        %v2125 = vld [vmem:[#allocation3 + $0x30] sm:$0xff]
        %v2126 = vld [vmem:[#allocation3 + $0x38] sm:$0xff]
        %v2127 = vld [vmem:[%s373] sm:$0x3]
        %v2129 = vlaneseq
        %v2130 = vshrl.u32 %v2129, 7
        %v2131 = vsub.s32 0, %v2130
        %v2132 = vrot.slane %v2127, %v2131
        %v2133 = vlaneseq
        %v2134 = vshrl.u32 %v2133, 7
        %v2135 = vsub.s32 1, %v2134
        %v2136 = vrot.slane %v2127, %v2135
        %v2139 = vmul.f32 %v2103, %v2132
        %v2140 = vmul.f32 %v2104, %v2136
        %v2141 = vmul.f32 %v2105, %v2132
        %v2142 = vmul.f32 %v2106, %v2136
        %v2143 = vmul.f32 %v2107, %v2132
        %v2144 = vmul.f32 %v2108, %v2136
        %v2145 = vmul.f32 %v2109, %v2132
        %v2146 = vmul.f32 %v2110, %v2136
        %v2147 = vmul.f32 %v2111, %v2132
        %v2148 = vmul.f32 %v2112, %v2136
        %v2149 = vmul.f32 %v2113, %v2132
        %v2150 = vmul.f32 %v2114, %v2136
        %v2151 = vmul.f32 %v2115, %v2132
        %v2152 = vmul.f32 %v2116, %v2136
        %v2153 = vmul.f32 %v2117, %v2132
        %v2154 = vmul.f32 %v2118, %v2136
        %v2155 = vadd.f32 %v2139, %v2140
        %2156 = vadd.xlane.f32.xlu0 %v2155
        %v2157 = vpop.xlane.xlu0 %2156
        %v2158 = vadd.f32 %v2141, %v2142
        %2159 = vadd.xlane.f32.xlu0 %v2158
        %v2160 = vpop.xlane.xlu0 %2159
        %v2161 = vadd.f32 %v2143, %v2144
        %2162 = vadd.xlane.f32.xlu0 %v2161
        %v2163 = vpop.xlane.xlu0 %2162
        %v2164 = vadd.f32 %v2145, %v2146
        %2165 = vadd.xlane.f32.xlu0 %v2164
        %v2166 = vpop.xlane.xlu0 %2165
        %v2167 = vadd.f32 %v2147, %v2148
        %2168 = vadd.xlane.f32.xlu0 %v2167
        %v2169 = vpop.xlane.xlu0 %2168
        %v2170 = vadd.f32 %v2149, %v2150
        %2171 = vadd.xlane.f32.xlu0 %v2170
        %v2172 = vpop.xlane.xlu0 %2171
        %v2173 = vadd.f32 %v2151, %v2152
        %2174 = vadd.xlane.f32.xlu0 %v2173
        %v2175 = vpop.xlane.xlu0 %2174
        %v2176 = vadd.f32 %v2153, %v2154
        %2177 = vadd.xlane.f32.xlu0 %v2176
        %v2178 = vpop.xlane.xlu0 %2177
        %v2179 = vadd.f32 %v2119, %v2157
        %v2180 = vadd.f32 %v2120, %v2160
        %v2181 = vadd.f32 %v2121, %v2163
        %v2182 = vadd.f32 %v2122, %v2166
        %v2183 = vadd.f32 %v2123, %v2169
        %v2184 = vadd.f32 %v2124, %v2172
        %v2185 = vadd.f32 %v2125, %v2175
        %v2186 = vadd.f32 %v2126, %v2178
        %vm2187 = vcmask 7168
        %2188 = vst.msk [vmem:[#allocation3] sm:$0xff] %vm2187, %v2179
        %2189 = vst.msk [vmem:[#allocation3 + $0x8] sm:$0xff] %vm2187, %v2180
        %2190 = vst.msk [vmem:[#allocation3 + $0x10] sm:$0xff] %vm2187, %v2181
        %2191 = vst.msk [vmem:[#allocation3 + $0x18] sm:$0xff] %vm2187, %v2182
        %2192 = vst.msk [vmem:[#allocation3 + $0x20] sm:$0xff] %vm2187, %v2183
        %2193 = vst.msk [vmem:[#allocation3 + $0x28] sm:$0xff] %vm2187, %v2184
        %2194 = vst.msk [vmem:[#allocation3 + $0x30] sm:$0xff] %vm2187, %v2185
        %2195 = vst.msk [vmem:[#allocation3 + $0x38] sm:$0xff] %vm2187, %v2186
        %p2196 = scmp.eq.s32.totalorder %s27, 3
        // Predicated region
        $region73: #{tpu_custom_call.1} parent=47 // pred_check
          %p2197 = pneg %p2196
        $region74: #{tpu_custom_call.1} parent=47 // pred_check_branch
          %2199 = sbr.rel (%p2197) target = $region76
        $region75: #{tpu_custom_call.1} parent=47 // pred_region
          %v2200 = vld [vmem:[#allocation3] sm:$0xff]
          %v2201 = vld [vmem:[#allocation3 + $0x8] sm:$0xff]
          %v2202 = vld [vmem:[#allocation3 + $0x10] sm:$0xff]
          %v2203 = vld [vmem:[#allocation3 + $0x18] sm:$0xff]
          %v2204 = vld [vmem:[#allocation3 + $0x20] sm:$0xff]
          %v2205 = vld [vmem:[#allocation3 + $0x28] sm:$0xff]
          %v2206 = vld [vmem:[#allocation3 + $0x30] sm:$0xff]
          %v2207 = vld [vmem:[#allocation3 + $0x38] sm:$0xff]
          %v2208 = vld [vmem:[#allocation4] sm:$0x1]
          %v2210 = vlaneseq
          %v2211 = vshrl.u32 %v2210, 7
          %v2212 = vsub.s32 0, %v2211
          %v2213 = vrot.slane %v2208, %v2212
          %v2215 = vadd.f32 %v2200, %v2213
          %v2216 = vadd.f32 %v2201, %v2213
          %v2217 = vadd.f32 %v2202, %v2213
          %v2218 = vadd.f32 %v2203, %v2213
          %v2219 = vadd.f32 %v2204, %v2213
          %v2220 = vadd.f32 %v2205, %v2213
          %v2221 = vadd.f32 %v2206, %v2213
          %v2222 = vadd.f32 %v2207, %v2213
          %v2223 = vxor.u32 %v2215, 2147483648
          %v2224 = vxor.u32 %v2216, 2147483648
          %v2225 = vxor.u32 %v2217, 2147483648
          %v2226 = vxor.u32 %v2218, 2147483648
          %v2227 = vxor.u32 %v2219, 2147483648
          %v2228 = vxor.u32 %v2220, 2147483648
          %v2229 = vxor.u32 %v2221, 2147483648
          %v2230 = vxor.u32 %v2222, 2147483648
          %v2231 = vmul.f32 %v2223, 1.442695
          %v2232 = vpow.pop %v2231
          %v2233 = vmul.f32 %v2224, 1.442695
          %v2234 = vpow.pop %v2233
          %v2235 = vmul.f32 %v2225, 1.442695
          %v2236 = vpow.pop %v2235
          %v2237 = vmul.f32 %v2226, 1.442695
          %v2238 = vpow.pop %v2237
          %v2239 = vmul.f32 %v2227, 1.442695
          %v2240 = vpow.pop %v2239
          %v2241 = vmul.f32 %v2228, 1.442695
          %v2242 = vpow.pop %v2241
          %v2243 = vmul.f32 %v2229, 1.442695
          %v2244 = vpow.pop %v2243
          %v2245 = vmul.f32 %v2230, 1.442695
          %v2246 = vpow.pop %v2245
          %v2247 = vadd.f32 %v2232, 1.0
          %v2248 = vadd.f32 %v2234, 1.0
          %v2249 = vadd.f32 %v2236, 1.0
          %v2250 = vadd.f32 %v2238, 1.0
          %v2251 = vadd.f32 %v2240, 1.0
          %v2252 = vadd.f32 %v2242, 1.0
          %v2253 = vadd.f32 %v2244, 1.0
          %v2254 = vadd.f32 %v2246, 1.0
          %v2255 = vrcp.pop %v2247
          %v2256 = vmul.f32 1.0, %v2255
          %v2257 = vrcp.pop %v2248
          %v2258 = vmul.f32 1.0, %v2257
          %v2259 = vrcp.pop %v2249
          %v2260 = vmul.f32 1.0, %v2259
          %v2261 = vrcp.pop %v2250
          %v2262 = vmul.f32 1.0, %v2261
          %v2263 = vrcp.pop %v2251
          %v2264 = vmul.f32 1.0, %v2263
          %v2265 = vrcp.pop %v2252
          %v2266 = vmul.f32 1.0, %v2265
          %v2267 = vrcp.pop %v2253
          %v2268 = vmul.f32 1.0, %v2267
          %v2269 = vrcp.pop %v2254
          %v2270 = vmul.f32 1.0, %v2269
          %2271 = vst.msk [vmem:[%s432] sm:$0xff] %vm2187, %v2256
          %2272 = vst.msk [vmem:[%s432 + $0x8] sm:$0xff] %vm2187, %v2258
          %2273 = vst.msk [vmem:[%s432 + $0x10] sm:$0xff] %vm2187, %v2260
          %2274 = vst.msk [vmem:[%s432 + $0x18] sm:$0xff] %vm2187, %v2262
          %2275 = vst.msk [vmem:[%s432 + $0x20] sm:$0xff] %vm2187, %v2264
          %2276 = vst.msk [vmem:[%s432 + $0x28] sm:$0xff] %vm2187, %v2266
          %2277 = vst.msk [vmem:[%s432 + $0x30] sm:$0xff] %vm2187, %v2268
          %2278 = vst.msk [vmem:[%s432 + $0x38] sm:$0xff] %vm2187, %v2270
        $region76: #{tpu_custom_call.1} parent=47 // pred_fallthru
          _
        %s2279 = smul.u32 8, %s26
        %p2280 = scmp.lt.s32.totalorder %s2279, 7
        %s2281 = scalar_select %p2280, %s2279, 7
        %s2282 = smul.addr %s2281, 8
        %s2283 = scalar_lea.vmem %s7, %s2282
        // Predicated region
        $region77: #{tpu_custom_call.1} parent=47 // pred_check
          %p2284 = pneg %p219
        $region78: #{tpu_custom_call.1} parent=47 // pred_check_branch
          %2286 = sbr.rel (%p2284) target = $region80
        $region79: #{tpu_custom_call.1} parent=47 // pred_region
          %s2287 = smul.u32 8, %s26
        $region80: #{tpu_custom_call.1} parent=47 // pred_fallthru
          _
        // Predicated region
        $region81: #{tpu_custom_call.1} parent=47 // pred_check
          %p2288 = pneg %p219
        $region82: #{tpu_custom_call.1} parent=47 // pred_check_branch
          %2290 = sbr.rel (%p2288) target = $region84
        $region83: #{tpu_custom_call.1} parent=47 // pred_region
          %s2291 = smul.u32 8, %s26
          %p2292 = scmp.lt.s32.totalorder %s2291, 7
          %s2293 = scalar_select %p2292, %s2291, 7
          %s2294 = smul.addr %s2293, 8
          %s2295 = scalar_lea.vmem %s7, %s2294
        $region84: #{tpu_custom_call.1} parent=47 // pred_fallthru
          _
      $region48: #{tpu_custom_call.1} parent=5 // pred_fallthru
        _
      %p2296 = scmp.le.s32.totalorder 2, %s17
      // Predicated region
      $region85: #{tpu_custom_call.1} parent=5 // pred_check
        %p2297 = pneg %p2296
      $region86: #{tpu_custom_call.1} parent=5 // pred_check_branch
        %2299 = sbr.rel (%p2297) target = $region88
      $region87: #{tpu_custom_call.1} parent=5 // pred_region
        %s2300 = ssub.s32 %s17, 2
      $region88: #{tpu_custom_call.1} parent=5 // pred_fallthru
        _
    $region6: #{tpu_custom_call.1} parent=1 // loop_footer
      %s21 = sadd.s32 1, %s17
    $region7: #{tpu_custom_call.1} parent=1 // loop_footer_branch
      %16 = sbr.rel target = $region3
    $region8: #{tpu_custom_call.1} parent=1 // loop_exit
      _
    %2301 = vsyncpa [#allocation6], 1
    %s2302 = scalar_lea.sflag [#allocation6], 1
    %2303 = vsyncpa %s2302, 1
    %2304 = vsyncpa [#allocation8], 1

</llo_original>
